<compile_context>
chip_gen: v6e
topology: v6e:2x2x1
jax: 0.10.0
libtpu: 0.0.40
codegen_flags: <defaults>
</compile_context>

<pallas_src>
import functools

import jax
import jax.numpy as jnp
from jax.experimental import pallas as pl
from jax.experimental.pallas import tpu as pltpu


def _fine_tune_kernel(x_ref, w1_ref, g1_ref, be1_ref, r_ref, rt_ref,
                      w2_ref, b2_ref, g2_ref, be2_ref, p_ref, wlin_ref,
                      o_ref, *, rows, k2):
    eps = 1e-5
    f32 = jnp.float32

    # ---- Conv1d #1 (kernel=4, stride=4): all k2 window positions in ONE matmul
    # against the block-diagonal weight.  (rows, k2*cin*k1) @ (k2*cin*k1, k2*mid).
    x = x_ref[...]
    a_pre = jnp.dot(x, w1_ref[...], preferred_element_type=f32)      # (rows, k2*mid)

    ones = jnp.ones((1, rows), f32)

    # ---- BatchNorm1d(mid), training mode. Row reductions go through the MXU
    # (ones @ A), then the k2 window positions are folded with the constant
    # fold-matrix R (k2*mid, mid).  All stats stay in f32.
    inv_cnt1 = 1.0 / float(rows * k2)
    s1 = jnp.dot(jnp.dot(ones, a_pre, preferred_element_type=f32),
                 r_ref[...], preferred_element_type=f32)              # (1, mid)
    ss1 = jnp.dot(jnp.dot(ones, a_pre * a_pre, preferred_element_type=f32),
                  r_ref[...], preferred_element_type=f32)             # (1, mid)
    mu1 = s1 * inv_cnt1
    var1 = jnp.maximum(ss1 * inv_cnt1 - mu1 * mu1, 0.0)               # guard cancellation
    inv1 = jax.lax.rsqrt(var1 + eps)                                  # EUP slot
    scale1 = inv1 * g1_ref[...]                                       # (1, mid)
    shift1 = be1_ref[...] - mu1 * scale1
    # Broadcast (1, mid) -> (1, k2*mid) via a tiny constant matmul (no lane shuffles).
    scale1t = jnp.dot(scale1, rt_ref[...], preferred_element_type=f32)
    shift1t = jnp.dot(shift1, rt_ref[...], preferred_element_type=f32)

    a = jnp.maximum(a_pre * scale1t + shift1t, 0.0)                   # BN1 + ReLU
    a = a.astype(w2_ref.dtype)

    # ---- Conv1d #2 (kernel=4, stride=4) as ONE matmul; out channels zero-padded
    # to a lane-dense width, then conv bias + ReLU.
    b = jnp.dot(a, w2_ref[...], preferred_element_type=f32) + b2_ref[...]
    b = jnp.maximum(b, 0.0)                                           # (rows, out_pad)

    # ---- BatchNorm1d(out), training mode: stats over (N, T2) via MXU row sums.
    inv_cnt2 = 1.0 / float(rows)
    mu2 = jnp.dot(ones, b, preferred_element_type=f32) * inv_cnt2     # (1, out_pad)
    msq2 = jnp.dot(ones, b * b, preferred_element_type=f32) * inv_cnt2
    var2 = jnp.maximum(msq2 - mu2 * mu2, 0.0)
    inv2 = jax.lax.rsqrt(var2 + eps)

    # ---- AvgPool1d(64) as a pooling matmul; BN2 affine (per-channel) commutes with
    # mean pooling, so it and the Linear(1,1,no-bias) scalar are applied post-pool.
    pooled = jnp.dot(p_ref[...], b, preferred_element_type=f32)       # (n, out_pad)
    wlin = wlin_ref[0, 0]
    scale2 = inv2 * g2_ref[...] * wlin
    shift2 = (be2_ref[...] - mu2 * inv2 * g2_ref[...]) * wlin
    o_ref[...] = pooled * scale2 + shift2


def fine_tune_map_forward(x, params, *, matmul_dtype=jnp.float32):
    """x: (N, C_in, L) float32 (PyTorch NCL). Returns (N, out_channels, 1).

    matmul_dtype=jnp.bfloat16 can be used on v5e/v6e/v7x for higher MXU throughput
    (stats/epilogue stay f32); default is f32 to keep <=1e-3 output fidelity.
    """
    n, cin, L = x.shape
    k1 = k2 = 4
    t1 = L // k1
    t2 = t1 // k2
    # AvgPool1d(64) followed by Linear(in_features=1) forces L == 1024.
    assert L % (k1 * k2) == 0 and t2 == 64, "module requires L == 1024"

    mid = params["w1"].shape[0]
    out = params["w2"].shape[0]
    rows = n * t2
    patch = cin * k1
    out_pad = ((out + 127) // 128) * 128          # lane-dense output width

    f32 = jnp.float32

    # --- activation-side glue: im2col for both stride-4 convs in one shot.
    # (cin precedes L in memory, so this small transpose cannot be folded into a
    #  weight-side permutation; it is ~32 KB at the example shapes.)
    xp = (x.reshape(n, cin, t2, k2, k1)
           .transpose(0, 2, 3, 1, 4)
           .reshape(rows, k2 * patch)).astype(matmul_dtype)

    # --- weight-side glue (constant-foldable under jit).
    w1f = params["w1"].reshape(mid, patch).T.astype(f32)                  # (patch, mid)
    w1blk = jnp.kron(jnp.eye(k2, dtype=f32), w1f).astype(matmul_dtype)    # block-diagonal
    # conv1 bias b1 is intentionally dropped (cancelled by training-mode BN1).
    w2f = params["w2"].transpose(2, 1, 0).reshape(k2 * mid, out).astype(f32)
    w2p = jnp.pad(w2f, ((0, 0), (0, out_pad - out))).astype(matmul_dtype)

    g1 = params["g1"].reshape(1, mid).astype(f32)
    be1 = params["beta1"].reshape(1, mid).astype(f32)
    b2p = jnp.pad(params["b2"].reshape(1, out).astype(f32), ((0, 0), (0, out_pad - out)))
    g2p = jnp.pad(params["g2"].reshape(1, out).astype(f32), ((0, 0), (0, out_pad - out)))
    be2p = jnp.pad(params["beta2"].reshape(1, out).astype(f32), ((0, 0), (0, out_pad - out)))
    wlin = params["w_lin"].reshape(1, 1).astype(f32)

    # Fold matrix R (k2*mid, mid): sums the k2 window positions per mid channel;
    # R.T broadcasts (1, mid) vectors back to the fused (1, k2*mid) width.
    r_mat = jnp.tile(jnp.eye(mid, dtype=f32), (k2, 1))
    rt_mat = r_mat.T
    # Pooling matrix P (n, n*t2): per-sample mean over its t2 rows.
    pool = jnp.kron(jnp.eye(n, dtype=f32), jnp.full((1, t2), 1.0 / t2, f32))

    kernel = functools.partial(_fine_tune_kernel, rows=rows, k2=k2)
    vmem = pl.BlockSpec(memory_space=pltpu.MemorySpace.VMEM)
    smem = pl.BlockSpec(memory_space=pltpu.MemorySpace.SMEM)

    operands = (xp, w1blk, g1, be1, r_mat, rt_mat, w2p, b2p, g2p, be2p, pool, wlin)
    bytes_in = sum(int(a.size) * int(a.dtype.itemsize) for a in operands)
    flops = (2 * rows * (k2 * patch * k2 * mid + k2 * mid * out_pad)   # conv1 + conv2
             + 4 * rows * (k2 * mid + out_pad)                          # stats matmuls
             + 2 * n * rows * out_pad)                                  # pooling matmul

    # TODO(synk): for large N, add a grid over row-tiles with BlockSpec pipelining
    # (stats accumulated across an 'arbitrary' axis) and mark the batch-tile axis
    # 'parallel' for v7x megacore; whole-array VMEM residency is fine at N=2.
    pooled = pl.pallas_call(
        kernel,
        out_shape=jax.ShapeDtypeStruct((n, out_pad), f32),
        in_specs=[vmem] * 11 + [smem],
        out_specs=vmem,
        compiler_params=pltpu.CompilerParams(),
        cost_estimate=pl.CostEstimate(
            flops=int(flops),
            transcendentals=int(mid + out_pad),
            bytes_accessed=int(bytes_in + n * out_pad * 4)),
    )(*operands)

    return pooled[:, :out].reshape(n, out, 1)


def _ref_forward(x, params):
    """Pure-JAX reference (mirrors the PyTorch module in training mode)."""
    eps = 1e-5
    hi = jax.lax.Precision.HIGHEST
    a = jax.lax.conv_general_dilated(
        x, params["w1"], window_strides=(4,), padding="VALID",
        dimension_numbers=("NCH", "OIH", "NCH"),
        precision=hi) + params["b1"][None, :, None]
    mu = jnp.mean(a, axis=(0, 2), keepdims=True)
    var = jnp.var(a, axis=(0, 2), keepdims=True)
    a = (a - mu) / jnp.sqrt(var + eps) * params["g1"][None, :, None] \
        + params["beta1"][None, :, None]
    a = jnp.maximum(a, 0.0)
    b = jax.lax.conv_general_dilated(
        a, params["w2"], window_strides=(4,), padding="VALID",
        dimension_numbers=("NCH", "OIH", "NCH"),
        precision=hi) + params["b2"][None, :, None]
    b = jnp.maximum(b, 0.0)
    mu2 = jnp.mean(b, axis=(0, 2), keepdims=True)
    var2 = jnp.var(b, axis=(0, 2), keepdims=True)
    b = (b - mu2) / jnp.sqrt(var2 + eps) * params["g2"][None, :, None] \
        + params["beta2"][None, :, None]
    pooled = jnp.mean(b.reshape(b.shape[0], b.shape[1], -1, 64), axis=-1)  # (N, out, 1)
    return pooled * params["w_lin"][0, 0]


if __name__ == "__main__":
    N, CIN, MID, OUT, L = 2, 4, 8, 16, 1024
    key = jax.random.PRNGKey(0)
    ks = jax.random.split(key, 10)
    params = {
        "w1": 0.1 * jax.random.normal(ks[0], (MID, CIN, 4), jnp.float32),
        "b1": 0.1 * jax.random.normal(ks[1], (MID,), jnp.float32),
        "g1": 1.0 + 0.1 * jax.random.normal(ks[2], (MID,), jnp.float32),
        "beta1": 0.1 * jax.random.normal(ks[3], (MID,), jnp.float32),
        "w2": 0.1 * jax.random.normal(ks[4], (OUT, MID, 4), jnp.float32),
        "b2": 0.1 * jax.random.normal(ks[5], (OUT,), jnp.float32),
        "g2": 1.0 + 0.1 * jax.random.normal(ks[6], (OUT,), jnp.float32),
        "beta2": 0.1 * jax.random.normal(ks[7], (OUT,), jnp.float32),
        "w_lin": jax.random.normal(ks[8], (1, 1), jnp.float32),
    }
    x = jax.random.normal(ks[9], (N, CIN, L), jnp.float32)

    fwd = jax.jit(fine_tune_map_forward)
    y = fwd(x, params)
    jax.block_until_ready(y)

    y_ref = _ref_forward(x, params)
    assert y.shape == (N, OUT, 1)
    assert jnp.allclose(y, y_ref, atol=1e-3, rtol=1e-3), "mismatch vs reference"

    print("KERNEL_OK")
</pallas_src>

<mosaic_0001>
module attributes {stable_mosaic.version = 11 : i64} {
  func.func @_fine_tune_kernel(%arg0: memref<128x64xf32, #tpu.memory_space<vmem>>, %arg1: memref<64x32xf32, #tpu.memory_space<vmem>>, %arg2: memref<1x8xf32, #tpu.memory_space<vmem>>, %arg3: memref<1x8xf32, #tpu.memory_space<vmem>>, %arg4: memref<32x8xf32, #tpu.memory_space<vmem>>, %arg5: memref<8x32xf32, #tpu.memory_space<vmem>>, %arg6: memref<32x128xf32, #tpu.memory_space<vmem>>, %arg7: memref<1x128xf32, #tpu.memory_space<vmem>>, %arg8: memref<1x128xf32, #tpu.memory_space<vmem>>, %arg9: memref<1x128xf32, #tpu.memory_space<vmem>>, %arg10: memref<2x128xf32, #tpu.memory_space<vmem>>, %arg11: memref<1x1xf32, #tpu.memory_space<smem>>, %arg12: memref<2x128xf32, #tpu.memory_space<vmem>>) attributes {dimension_semantics = [], scalar_prefetch = 0 : i64, scratch_operands = 0 : i64, tpu.core_type = #tpu.core_type<tc>} {
    %c0 = arith.constant 0 : index
    %c0_0 = arith.constant 0 : index
    %0 = vector.load %arg0[%c0, %c0_0] : memref<128x64xf32, #tpu.memory_space<vmem>>, vector<128x64xf32>
    %c0_1 = arith.constant 0 : index
    %c0_2 = arith.constant 0 : index
    %1 = vector.load %arg1[%c0_1, %c0_2] : memref<64x32xf32, #tpu.memory_space<vmem>>, vector<64x32xf32>
    %cst = arith.constant dense<0.000000e+00> : vector<128x32xf32>
    %2 = tpu.matmul %0, %1, %cst {dimension_numbers = #tpu.dot_dimension_numbers<[1], [0], [0], [1], [0, 0, 1, 1], [], []>} : vector<128x64xf32>, vector<64x32xf32>, vector<128x32xf32> -> vector<128x32xf32>
    %cst_3 = arith.constant 1.000000e+00 : f32
    %3 = vector.broadcast %cst_3 : f32 to vector<1x128xf32>
    %cst_4 = arith.constant dense<0.000000e+00> : vector<1x32xf32>
    %4 = tpu.matmul %3, %2, %cst_4 {dimension_numbers = #tpu.dot_dimension_numbers<[1], [0], [0], [1], [0, 0, 1, 1], [], []>} : vector<1x128xf32>, vector<128x32xf32>, vector<1x32xf32> -> vector<1x32xf32>
    %c0_5 = arith.constant 0 : index
    %c0_6 = arith.constant 0 : index
    %5 = vector.load %arg4[%c0_5, %c0_6] : memref<32x8xf32, #tpu.memory_space<vmem>>, vector<32x8xf32>
    %cst_7 = arith.constant dense<0.000000e+00> : vector<1x8xf32>
    %6 = tpu.matmul %4, %5, %cst_7 {dimension_numbers = #tpu.dot_dimension_numbers<[1], [0], [0], [1], [0, 0, 1, 1], [], []>} : vector<1x32xf32>, vector<32x8xf32>, vector<1x8xf32> -> vector<1x8xf32>
    %7 = arith.mulf %2, %2 : vector<128x32xf32>
    %cst_8 = arith.constant dense<0.000000e+00> : vector<1x32xf32>
    %8 = tpu.matmul %3, %7, %cst_8 {dimension_numbers = #tpu.dot_dimension_numbers<[1], [0], [0], [1], [0, 0, 1, 1], [], []>} : vector<1x128xf32>, vector<128x32xf32>, vector<1x32xf32> -> vector<1x32xf32>
    %c0_9 = arith.constant 0 : index
    %c0_10 = arith.constant 0 : index
    %9 = vector.load %arg4[%c0_9, %c0_10] : memref<32x8xf32, #tpu.memory_space<vmem>>, vector<32x8xf32>
    %cst_11 = arith.constant dense<0.000000e+00> : vector<1x8xf32>
    %10 = tpu.matmul %8, %9, %cst_11 {dimension_numbers = #tpu.dot_dimension_numbers<[1], [0], [0], [1], [0, 0, 1, 1], [], []>} : vector<1x32xf32>, vector<32x8xf32>, vector<1x8xf32> -> vector<1x8xf32>
    %cst_12 = arith.constant 0.001953125 : f32
    %11 = vector.broadcast %cst_12 : f32 to vector<1x8xf32>
    %12 = arith.mulf %6, %11 : vector<1x8xf32>
    %cst_13 = arith.constant 0.001953125 : f32
    %13 = vector.broadcast %cst_13 : f32 to vector<1x8xf32>
    %14 = arith.mulf %10, %13 : vector<1x8xf32>
    %15 = arith.mulf %12, %12 : vector<1x8xf32>
    %16 = arith.subf %14, %15 : vector<1x8xf32>
    %cst_14 = arith.constant 0.000000e+00 : f32
    %17 = vector.broadcast %cst_14 : f32 to vector<1x8xf32>
    %18 = arith.maximumf %16, %17 : vector<1x8xf32>
    %cst_15 = arith.constant 9.99999974E-6 : f32
    %19 = vector.broadcast %cst_15 : f32 to vector<1x8xf32>
    %20 = arith.addf %18, %19 : vector<1x8xf32>
    %21 = math.rsqrt %20 : vector<1x8xf32>
    %c0_16 = arith.constant 0 : index
    %c0_17 = arith.constant 0 : index
    %22 = vector.load %arg2[%c0_16, %c0_17] : memref<1x8xf32, #tpu.memory_space<vmem>>, vector<1x8xf32>
    %23 = arith.mulf %21, %22 : vector<1x8xf32>
    %c0_18 = arith.constant 0 : index
    %c0_19 = arith.constant 0 : index
    %24 = vector.load %arg3[%c0_18, %c0_19] : memref<1x8xf32, #tpu.memory_space<vmem>>, vector<1x8xf32>
    %25 = arith.mulf %12, %23 : vector<1x8xf32>
    %26 = arith.subf %24, %25 : vector<1x8xf32>
    %c0_20 = arith.constant 0 : index
    %c0_21 = arith.constant 0 : index
    %27 = vector.load %arg5[%c0_20, %c0_21] : memref<8x32xf32, #tpu.memory_space<vmem>>, vector<8x32xf32>
    %cst_22 = arith.constant dense<0.000000e+00> : vector<1x32xf32>
    %28 = tpu.matmul %23, %27, %cst_22 {dimension_numbers = #tpu.dot_dimension_numbers<[1], [0], [0], [1], [0, 0, 1, 1], [], []>} : vector<1x8xf32>, vector<8x32xf32>, vector<1x32xf32> -> vector<1x32xf32>
    %c0_23 = arith.constant 0 : index
    %c0_24 = arith.constant 0 : index
    %29 = vector.load %arg5[%c0_23, %c0_24] : memref<8x32xf32, #tpu.memory_space<vmem>>, vector<8x32xf32>
    %cst_25 = arith.constant dense<0.000000e+00> : vector<1x32xf32>
    %30 = tpu.matmul %26, %29, %cst_25 {dimension_numbers = #tpu.dot_dimension_numbers<[1], [0], [0], [1], [0, 0, 1, 1], [], []>} : vector<1x8xf32>, vector<8x32xf32>, vector<1x32xf32> -> vector<1x32xf32>
    %31 = vector.broadcast %28 : vector<1x32xf32> to vector<128x32xf32>
    %32 = arith.mulf %2, %31 : vector<128x32xf32>
    %33 = vector.broadcast %30 : vector<1x32xf32> to vector<128x32xf32>
    %34 = arith.addf %32, %33 : vector<128x32xf32>
    %cst_26 = arith.constant 0.000000e+00 : f32
    %35 = vector.broadcast %cst_26 : f32 to vector<128x32xf32>
    %36 = arith.maximumf %34, %35 : vector<128x32xf32>
    %c0_27 = arith.constant 0 : index
    %c0_28 = arith.constant 0 : index
    %37 = vector.load %arg6[%c0_27, %c0_28] : memref<32x128xf32, #tpu.memory_space<vmem>>, vector<32x128xf32>
    %cst_29 = arith.constant dense<0.000000e+00> : vector<128x128xf32>
    %38 = tpu.matmul %36, %37, %cst_29 {dimension_numbers = #tpu.dot_dimension_numbers<[1], [0], [0], [1], [0, 0, 1, 1], [], []>} : vector<128x32xf32>, vector<32x128xf32>, vector<128x128xf32> -> vector<128x128xf32>
    %c0_30 = arith.constant 0 : index
    %c0_31 = arith.constant 0 : index
    %39 = vector.load %arg7[%c0_30, %c0_31] : memref<1x128xf32, #tpu.memory_space<vmem>>, vector<1x128xf32>
    %40 = vector.broadcast %39 : vector<1x128xf32> to vector<128x128xf32>
    %41 = arith.addf %38, %40 : vector<128x128xf32>
    %cst_32 = arith.constant 0.000000e+00 : f32
    %42 = vector.broadcast %cst_32 : f32 to vector<128x128xf32>
    %43 = arith.maximumf %41, %42 : vector<128x128xf32>
    %cst_33 = arith.constant dense<0.000000e+00> : vector<1x128xf32>
    %44 = tpu.matmul %3, %43, %cst_33 {dimension_numbers = #tpu.dot_dimension_numbers<[1], [0], [0], [1], [0, 0, 1, 1], [], []>} : vector<1x128xf32>, vector<128x128xf32>, vector<1x128xf32> -> vector<1x128xf32>
    %cst_34 = arith.constant 7.812500e-03 : f32
    %45 = vector.broadcast %cst_34 : f32 to vector<1x128xf32>
    %46 = arith.mulf %44, %45 : vector<1x128xf32>
    %47 = arith.mulf %43, %43 : vector<128x128xf32>
    %cst_35 = arith.constant dense<0.000000e+00> : vector<1x128xf32>
    %48 = tpu.matmul %3, %47, %cst_35 {dimension_numbers = #tpu.dot_dimension_numbers<[1], [0], [0], [1], [0, 0, 1, 1], [], []>} : vector<1x128xf32>, vector<128x128xf32>, vector<1x128xf32> -> vector<1x128xf32>
    %cst_36 = arith.constant 7.812500e-03 : f32
    %49 = vector.broadcast %cst_36 : f32 to vector<1x128xf32>
    %50 = arith.mulf %48, %49 : vector<1x128xf32>
    %51 = arith.mulf %46, %46 : vector<1x128xf32>
    %52 = arith.subf %50, %51 : vector<1x128xf32>
    %cst_37 = arith.constant 0.000000e+00 : f32
    %53 = vector.broadcast %cst_37 : f32 to vector<1x128xf32>
    %54 = arith.maximumf %52, %53 : vector<1x128xf32>
    %cst_38 = arith.constant 9.99999974E-6 : f32
    %55 = vector.broadcast %cst_38 : f32 to vector<1x128xf32>
    %56 = arith.addf %54, %55 : vector<1x128xf32>
    %57 = math.rsqrt %56 : vector<1x128xf32>
    %c0_39 = arith.constant 0 : index
    %c0_40 = arith.constant 0 : index
    %58 = vector.load %arg10[%c0_39, %c0_40] : memref<2x128xf32, #tpu.memory_space<vmem>>, vector<2x128xf32>
    %cst_41 = arith.constant dense<0.000000e+00> : vector<2x128xf32>
    %59 = tpu.matmul %58, %43, %cst_41 {dimension_numbers = #tpu.dot_dimension_numbers<[1], [0], [0], [1], [0, 0, 1, 1], [], []>} : vector<2x128xf32>, vector<128x128xf32>, vector<2x128xf32> -> vector<2x128xf32>
    %c0_42 = arith.constant 0 : index
    %c0_43 = arith.constant 0 : index
    %60 = memref.load %arg11[%c0_42, %c0_43] : memref<1x1xf32, #tpu.memory_space<smem>>
    %c0_44 = arith.constant 0 : index
    %c0_45 = arith.constant 0 : index
    %61 = vector.load %arg8[%c0_44, %c0_45] : memref<1x128xf32, #tpu.memory_space<vmem>>, vector<1x128xf32>
    %62 = arith.mulf %57, %61 : vector<1x128xf32>
    %63 = vector.broadcast %60 : f32 to vector<1x128xf32>
    %64 = arith.mulf %62, %63 : vector<1x128xf32>
    %c0_46 = arith.constant 0 : index
    %c0_47 = arith.constant 0 : index
    %65 = vector.load %arg9[%c0_46, %c0_47] : memref<1x128xf32, #tpu.memory_space<vmem>>, vector<1x128xf32>
    %66 = arith.mulf %46, %57 : vector<1x128xf32>
    %c0_48 = arith.constant 0 : index
    %c0_49 = arith.constant 0 : index
    %67 = vector.load %arg8[%c0_48, %c0_49] : memref<1x128xf32, #tpu.memory_space<vmem>>, vector<1x128xf32>
    %68 = arith.mulf %66, %67 : vector<1x128xf32>
    %69 = arith.subf %65, %68 : vector<1x128xf32>
    %70 = vector.broadcast %60 : f32 to vector<1x128xf32>
    %71 = arith.mulf %69, %70 : vector<1x128xf32>
    %72 = vector.broadcast %64 : vector<1x128xf32> to vector<2x128xf32>
    %73 = arith.mulf %59, %72 : vector<2x128xf32>
    %74 = vector.broadcast %71 : vector<1x128xf32> to vector<2x128xf32>
    %75 = arith.addf %73, %74 : vector<2x128xf32>
    %c0_50 = arith.constant 0 : index
    %c0_51 = arith.constant 0 : index
    %76 = vector.load %arg12[%c0_50, %c0_51] : memref<2x128xf32, #tpu.memory_space<vmem>>, vector<2x128xf32>
    tpu.vector_store %arg12[%c0_50, %c0_51], %75 {strides = array<i32>} : memref<2x128xf32, #tpu.memory_space<vmem>>, vector<2x128xf32>,
    return
  }
}

</mosaic_0001>

<llo_original>
// kernel: tile.9
$region0: #{tile.9}
  %s0 = inlined_call_operand.vmem [shape: f32[4,8,8], index: 0, kind: input, shape index: {}]
  %s1 = inlined_call_operand.vmem [shape: f32[32,8], index: 1, kind: output, shape index: {}]
  $region1: #{tile.9} parent=0
    #allocation0 [shape = 'u8[32768]{0}', space=vmem, size = 0x8000, scoped, tag = 'scoped mem for input reshape']
    %s3 = sshll.u32 1, 4
    %s4 = ssub.s32 %s3, 1
    %s5 = smul.addr 4, 7
    %s6 = scalar_lea.vmem %s0, %s5
    %v7 = vld [vmem:[%s6] sm:%s4]
    %s8 = scalar_lea.vmem [#allocation0], 56
    %9 = vst [vmem:[%s8] sm:%s4] %v7
    %s10 = smul.addr 4, 6
    %s11 = scalar_lea.vmem %s0, %s10
    %v12 = vld [vmem:[%s11] sm:%s4]
    %s13 = scalar_lea.vmem [#allocation0], 48
    %14 = vst [vmem:[%s13] sm:%s4] %v12
    %s15 = smul.addr 4, 5
    %s16 = scalar_lea.vmem %s0, %s15
    %v17 = vld [vmem:[%s16] sm:%s4]
    %s18 = scalar_lea.vmem [#allocation0], 40
    %19 = vst [vmem:[%s18] sm:%s4] %v17
    %s20 = smul.addr 4, 4
    %s21 = scalar_lea.vmem %s0, %s20
    %v22 = vld [vmem:[%s21] sm:%s4]
    %s23 = scalar_lea.vmem [#allocation0], 32
    %24 = vst [vmem:[%s23] sm:%s4] %v22
    %s25 = smul.addr 4, 3
    %s26 = scalar_lea.vmem %s0, %s25
    %v27 = vld [vmem:[%s26] sm:%s4]
    %s28 = scalar_lea.vmem [#allocation0], 24
    %29 = vst [vmem:[%s28] sm:%s4] %v27
    %s30 = smul.addr 4, 2
    %s31 = scalar_lea.vmem %s0, %s30
    %v32 = vld [vmem:[%s31] sm:%s4]
    %s33 = scalar_lea.vmem [#allocation0], 16
    %34 = vst [vmem:[%s33] sm:%s4] %v32
    %s35 = scalar_lea.vmem %s0, 4
    %v36 = vld [vmem:[%s35] sm:%s4]
    %s37 = scalar_lea.vmem [#allocation0], 8
    %38 = vst [vmem:[%s37] sm:%s4] %v36
    %v39 = vld [vmem:[%s0] sm:%s4]
    %40 = vst [vmem:[#allocation0] sm:%s4] %v39
    %v41 = vld [vmem:[#allocation0] ss:$8 sm:$0xf]
    %v42 = vld [vmem:[#allocation0] ss:$8 sm:$0xf0]
    %vm43 = vcmask 1047556
    %v44 = vsel %vm43, %v42, %v41
    %vm45 = vcmask 64512
    %46 = vst.msk [vmem:[%s1] sm:$0xff] %vm45, %v44
    %s47 = scalar_lea.vmem [#allocation0], 3
    %v48 = vld [vmem:[%s47] ss:$8 sm:$0xf]
    %s49 = scalar_lea.vmem [#allocation0], 3
    %v50 = vld [vmem:[%s49] ss:$8 sm:$0xf0]
    %vm51 = vcmask 1047556
    %v52 = vsel %vm51, %v50, %v48
    %53 = vrot.lane.b32.xlu0 %v52, 24
    %v54 = vpop.permute.xlu0 %53
    %vm55 = vcmask 261312
    %56 = vst.msk [vmem:[%s1] sm:$0xff] %vm55, %v54
    %s57 = scalar_lea.vmem [#allocation0], 2
    %v58 = vld [vmem:[%s57] ss:$8 sm:$0xf]
    %s59 = scalar_lea.vmem [#allocation0], 2
    %v60 = vld [vmem:[%s59] ss:$8 sm:$0xf0]
    %vm61 = vcmask 1047556
    %v62 = vsel %vm61, %v60, %v58
    %63 = vrot.lane.b32.xlu0 %v62, 16
    %v64 = vpop.permute.xlu0 %63
    %vm65 = vcmask 195712
    %66 = vst.msk [vmem:[%s1] sm:$0xff] %vm65, %v64
    %s67 = scalar_lea.vmem [#allocation0], 1
    %v68 = vld [vmem:[%s67] ss:$8 sm:$0xf]
    %s69 = scalar_lea.vmem [#allocation0], 1
    %v70 = vld [vmem:[%s69] ss:$8 sm:$0xf0]
    %vm71 = vcmask 1047556
    %v72 = vsel %vm71, %v70, %v68
    %73 = vrot.lane.b32.xlu0 %v72, 8
    %v74 = vpop.permute.xlu0 %73
    %vm75 = vcmask 130112
    %76 = vst.msk [vmem:[%s1] sm:$0xff] %vm75, %v74

// kernel: fine_tune_map_forward.1
$region0: #{fine_tune_map_forward.1}
  #allocation0 [shape = 'u32[]', space=smem, size = 0x4, offset = 0x4, fixed_abs, tag = 'smem constant byte address 0x4 - core index']
  #allocation1 [shape = 'u32[144,128]{1,0:T(1,128)}', space=vmem, size = 0x12000, scoped, tag = 'internal scratch']
  #allocation2 [shape = 'f32[1,1]{1,0:T(1,128)S(6)}', space=smem, size = 0x200, scoped, tag = 'scoped memory for fine_tune_map_forward.1']
  %s0 = inlined_call_operand.vmem [shape: f32[128,64], index: 0, kind: input, shape index: {}]
  %s1 = inlined_call_operand.vmem [shape: f32[64,32], index: 1, kind: input, shape index: {}]
  %s2 = inlined_call_operand.vmem [shape: f32[1,8], index: 2, kind: input, shape index: {}]
  %s3 = inlined_call_operand.vmem [shape: f32[1,8], index: 3, kind: input, shape index: {}]
  %s4 = inlined_call_operand.vmem [shape: f32[32,8], index: 4, kind: input, shape index: {}]
  %s5 = inlined_call_operand.vmem [shape: f32[8,32], index: 5, kind: input, shape index: {}]
  %s6 = inlined_call_operand.vmem [shape: f32[32,128], index: 6, kind: input, shape index: {}]
  %s7 = inlined_call_operand.vmem [shape: f32[1,128], index: 7, kind: input, shape index: {}]
  %s8 = inlined_call_operand.vmem [shape: f32[1,128], index: 8, kind: input, shape index: {}]
  %s9 = inlined_call_operand.vmem [shape: f32[1,128], index: 9, kind: input, shape index: {}]
  %s10 = inlined_call_operand.vmem [shape: f32[2,128], index: 10, kind: input, shape index: {}]
  %s11 = inlined_call_operand.<no memory space> [shape: f32[1,1], index: 11, kind: input, shape index: {}]
  %s12 = inlined_call_operand.hbm [shape: f32[2,128], index: 12, kind: output, shape index: {}]
  %s13 = sld [smem:[#allocation0]]
  $region58: #{fine_tune_map_forward.1} parent=0
    _
  %s15 = ssub.s32 1, %s13
  %s16 = scalar_select 0, %s15, %s13
  %17 = sst [smem:[#allocation2]] %s11
  $region1: #{fine_tune_map_forward.1} parent=0
    #allocation3 [shape = 'u8[1024]{0}', space=vmem, size = 0x400, scoped, tag = 'output window, operand 0, single buffered']
    #allocation4 [shape = 's32[1]{0}', space=sflag, size = 0x4, scoped, tag = 'scoped memory for fine_tune_map_forward.1']
    %18 = vsyncpa [#allocation4], 0
    // Predicated region
    $region2: #{fine_tune_map_forward.1} parent=1 // pred_check
      _
    $region3: #{fine_tune_map_forward.1} parent=1 // pred_check_branch
      %20 = sbr.rel (0) target = $region5
    $region4: #{fine_tune_map_forward.1} parent=1 // pred_region
      _
    $region5: #{fine_tune_map_forward.1} parent=1 // pred_fallthru
      _
    // Predicated region
    $region6: #{fine_tune_map_forward.1} parent=1 // pred_check
      _
    $region7: #{fine_tune_map_forward.1} parent=1 // pred_check_branch
      %22 = sbr.rel (0) target = $region9
    $region8: #{fine_tune_map_forward.1} parent=1 // pred_region
      _
    $region9: #{fine_tune_map_forward.1} parent=1 // pred_fallthru
      _
    // Predicated region
    $region10: #{fine_tune_map_forward.1} parent=1 // pred_check
      _
    $region11: #{fine_tune_map_forward.1} parent=1 // pred_check_branch
      %24 = sbr.rel (0) target = $region13
    $region12: #{fine_tune_map_forward.1} parent=1 // pred_region
      _
    $region13: #{fine_tune_map_forward.1} parent=1 // pred_fallthru
      _
    // Predicated region
    $region14: #{fine_tune_map_forward.1} parent=1 // pred_check
      _
    $region15: #{fine_tune_map_forward.1} parent=1 // pred_check_branch
      %26 = sbr.rel (0) target = $region17
    $region16: #{fine_tune_map_forward.1} parent=1 // pred_region
      _
    $region17: #{fine_tune_map_forward.1} parent=1 // pred_fallthru
      _
    // Predicated region
    $region18: #{fine_tune_map_forward.1} parent=1 // pred_check
      _
    $region19: #{fine_tune_map_forward.1} parent=1 // pred_check_branch
      %28 = sbr.rel (0) target = $region21
    $region20: #{fine_tune_map_forward.1} parent=1 // pred_region
      _
    $region21: #{fine_tune_map_forward.1} parent=1 // pred_fallthru
      _
    // Predicated region
    $region22: #{fine_tune_map_forward.1} parent=1 // pred_check
      _
    $region23: #{fine_tune_map_forward.1} parent=1 // pred_check_branch
      %30 = sbr.rel (0) target = $region25
    $region24: #{fine_tune_map_forward.1} parent=1 // pred_region
      _
    $region25: #{fine_tune_map_forward.1} parent=1 // pred_fallthru
      _
    // Predicated region
    $region26: #{fine_tune_map_forward.1} parent=1 // pred_check
      _
    $region27: #{fine_tune_map_forward.1} parent=1 // pred_check_branch
      %32 = sbr.rel (0) target = $region29
    $region28: #{fine_tune_map_forward.1} parent=1 // pred_region
      _
    $region29: #{fine_tune_map_forward.1} parent=1 // pred_fallthru
      _
    // Predicated region
    $region30: #{fine_tune_map_forward.1} parent=1 // pred_check
      _
    $region31: #{fine_tune_map_forward.1} parent=1 // pred_check_branch
      %34 = sbr.rel (0) target = $region33
    $region32: #{fine_tune_map_forward.1} parent=1 // pred_region
      _
    $region33: #{fine_tune_map_forward.1} parent=1 // pred_fallthru
      _
    // Predicated region
    $region34: #{fine_tune_map_forward.1} parent=1 // pred_check
      _
    $region35: #{fine_tune_map_forward.1} parent=1 // pred_check_branch
      %36 = sbr.rel (0) target = $region37
    $region36: #{fine_tune_map_forward.1} parent=1 // pred_region
      _
    $region37: #{fine_tune_map_forward.1} parent=1 // pred_fallthru
      _
    // Predicated region
    $region38: #{fine_tune_map_forward.1} parent=1 // pred_check
      _
    $region39: #{fine_tune_map_forward.1} parent=1 // pred_check_branch
      %38 = sbr.rel (0) target = $region41
    $region40: #{fine_tune_map_forward.1} parent=1 // pred_region
      _
    $region41: #{fine_tune_map_forward.1} parent=1 // pred_fallthru
      _
    // Predicated region
    $region42: #{fine_tune_map_forward.1} parent=1 // pred_check
      _
    $region43: #{fine_tune_map_forward.1} parent=1 // pred_check_branch
      %40 = sbr.rel (0) target = $region45
    $region44: #{fine_tune_map_forward.1} parent=1 // pred_region
      _
    $region45: #{fine_tune_map_forward.1} parent=1 // pred_fallthru
      _
    // Predicated region
    $region46: #{fine_tune_map_forward.1} parent=1 // pred_check
      _
    $region47: #{fine_tune_map_forward.1} parent=1 // pred_check_branch
      %42 = sbr.rel (0) target = $region49
    $region48: #{fine_tune_map_forward.1} parent=1 // pred_region
      _
    $region49: #{fine_tune_map_forward.1} parent=1 // pred_fallthru
      _
    %v43 = vld [vmem:[%s0] sm:$0xff]
    %v44 = vld [vmem:[%s0 + $0x8] sm:$0xff]
    %v45 = vld [vmem:[%s0 + $0x10] sm:$0xff]
    %v46 = vld [vmem:[%s0 + $0x18] sm:$0xff]
    %v47 = vld [vmem:[%s0 + $0x20] sm:$0xff]
    %v48 = vld [vmem:[%s0 + $0x28] sm:$0xff]
    %v49 = vld [vmem:[%s0 + $0x30] sm:$0xff]
    %v50 = vld [vmem:[%s0 + $0x38] sm:$0xff]
    %v51 = vld [vmem:[%s0 + $0x40] sm:$0xff]
    %v52 = vld [vmem:[%s0 + $0x48] sm:$0xff]
    %v53 = vld [vmem:[%s0 + $0x50] sm:$0xff]
    %v54 = vld [vmem:[%s0 + $0x58] sm:$0xff]
    %v55 = vld [vmem:[%s0 + $0x60] sm:$0xff]
    %v56 = vld [vmem:[%s0 + $0x68] sm:$0xff]
    %v57 = vld [vmem:[%s0 + $0x70] sm:$0xff]
    %v58 = vld [vmem:[%s0 + $0x78] sm:$0xff]
    %v59 = vld [vmem:[%s1] sm:$0xff]
    %v60 = vld [vmem:[%s1 + $0x8] sm:$0xff]
    %v61 = vld [vmem:[%s1 + $0x10] sm:$0xff]
    %v62 = vld [vmem:[%s1 + $0x18] sm:$0xff]
    %v63 = vld [vmem:[%s1 + $0x20] sm:$0xff]
    %v64 = vld [vmem:[%s1 + $0x28] sm:$0xff]
    %v65 = vld [vmem:[%s1 + $0x30] sm:$0xff]
    %v66 = vld [vmem:[%s1 + $0x38] sm:$0xff]
    %vm67 = vcmask 523264
    %v69 = vsel %vm67, %v43, 0
    %v72 = vsel %vm67, %v44, 0
    %v75 = vsel %vm67, %v45, 0
    %v78 = vsel %vm67, %v46, 0
    %v81 = vsel %vm67, %v47, 0
    %v84 = vsel %vm67, %v48, 0
    %v87 = vsel %vm67, %v49, 0
    %v90 = vsel %vm67, %v50, 0
    %v93 = vsel %vm67, %v51, 0
    %v96 = vsel %vm67, %v52, 0
    %v99 = vsel %vm67, %v53, 0
    %v102 = vsel %vm67, %v54, 0
    %v105 = vsel %vm67, %v55, 0
    %v108 = vsel %vm67, %v56, 0
    %v111 = vsel %vm67, %v57, 0
    %v114 = vsel %vm67, %v58, 0
    %116 = vmatprep.subr.mxu0 0.0
    %117 = vmatpush1.msra.mxu0 0.0
    %118 = vmatprep.subr.mxu0 0.0
    %119 = vmatpush1.msra.mxu0 0.0
    %120 = vmatprep.subr.mxu0 0.0
    %121 = vmatpush1.msra.mxu0 0.0
    %122 = vmatprep.subr.mxu0 0.0
    %123 = vmatpush1.msra.mxu0 0.0
    %124 = vmatprep.subr.mxu0 0.0
    %125 = vmatpush1.msra.mxu0 0.0
    %126 = vmatprep.subr.mxu0 0.0
    %127 = vmatpush1.msra.mxu0 0.0
    %128 = vmatprep.subr.mxu0 0.0
    %129 = vmatpush1.msra.mxu0 0.0
    %130 = vmatprep.subr.mxu0 0.0
    %131 = vmatpush1.msra.mxu0 0.0
    %132 = vmatprep.subr.mxu0 0.0
    %133 = vmatpush1.msra.mxu0 %v66
    %134 = vmatprep.subr.mxu0 0.0
    %135 = vmatpush1.msra.mxu0 %v65
    %136 = vmatprep.subr.mxu0 0.0
    %137 = vmatpush1.msra.mxu0 %v64
    %138 = vmatprep.subr.mxu0 0.0
    %139 = vmatpush1.msra.mxu0 %v63
    %140 = vmatprep.subr.mxu0 0.0
    %141 = vmatpush1.msra.mxu0 %v62
    %142 = vmatprep.subr.mxu0 0.0
    %143 = vmatpush1.msra.mxu0 %v61
    %144 = vmatprep.subr.mxu0 0.0
    %145 = vmatpush1.msra.mxu0 %v60
    %146 = vmatprep.subr.mxu0 0.0
    %147 = vmatpush1.msra.mxu0 %v59
    %148 = vmatprep.subr.mxu0 0.0
    %149 = vmatpush2.msra.mxu0 0.0
    %150 = vmatprep.subr.mxu0 0.0
    %151 = vmatpush2.msra.mxu0 0.0
    %152 = vmatprep.subr.mxu0 0.0
    %153 = vmatpush2.msra.mxu0 0.0
    %154 = vmatprep.subr.mxu0 0.0
    %155 = vmatpush2.msra.mxu0 0.0
    %156 = vmatprep.subr.mxu0 0.0
    %157 = vmatpush2.msra.mxu0 0.0
    %158 = vmatprep.subr.mxu0 0.0
    %159 = vmatpush2.msra.mxu0 0.0
    %160 = vmatprep.subr.mxu0 0.0
    %161 = vmatpush2.msra.mxu0 0.0
    %162 = vmatprep.subr.mxu0 0.0
    %163 = vmatpush2.msra.mxu0 0.0
    %164 = vmatprep.subr.mxu0 0.0
    %165 = vmatpush2.msra.mxu0 0.0
    %166 = vmatprep.subr.mxu0 0.0
    %167 = vmatpush2.msra.mxu0 0.0
    %168 = vmatprep.subr.mxu0 0.0
    %169 = vmatpush2.msra.mxu0 0.0
    %170 = vmatprep.subr.mxu0 0.0
    %171 = vmatpush2.msra.mxu0 0.0
    %172 = vmatprep.subr.mxu0 0.0
    %173 = vmatpush2.msra.mxu0 0.0
    %174 = vmatprep.subr.mxu0 0.0
    %175 = vmatpush2.msra.mxu0 0.0
    %176 = vmatprep.subr.mxu0 0.0
    %177 = vmatpush2.msra.mxu0 0.0
    %178 = vmatprep.subr.mxu0 0.0
    %179 = vmatpush2.msra.mxu0 0.0
    %180 = vmatprep.mubr.f32.mxu0 0.0
    %181 = vmatmul.mubr.f32.gmra.mxu0 %v69
    %v182 = vpop.f32.mrf.mxu0
    %v183 = vadd.f32 0.0, %v182
    %v184 = vpop.f32.mrf.mxu0
    %185 = vmatprep.mubr.f32.mxu0 0.0
    %186 = vmatmul.mubr.f32.gmra.mxu0 %v72
    %v187 = vpop.f32.mrf.mxu0
    %v188 = vadd.f32 0.0, %v187
    %v189 = vpop.f32.mrf.mxu0
    %190 = vmatprep.mubr.f32.mxu0 0.0
    %191 = vmatmul.mubr.f32.gmra.mxu0 %v75
    %v192 = vpop.f32.mrf.mxu0
    %v193 = vadd.f32 0.0, %v192
    %v194 = vpop.f32.mrf.mxu0
    %195 = vmatprep.mubr.f32.mxu0 0.0
    %196 = vmatmul.mubr.f32.gmra.mxu0 %v78
    %v197 = vpop.f32.mrf.mxu0
    %v198 = vadd.f32 0.0, %v197
    %v199 = vpop.f32.mrf.mxu0
    %200 = vmatprep.mubr.f32.mxu0 0.0
    %201 = vmatmul.mubr.f32.gmra.mxu0 %v81
    %v202 = vpop.f32.mrf.mxu0
    %v203 = vadd.f32 0.0, %v202
    %v204 = vpop.f32.mrf.mxu0
    %205 = vmatprep.mubr.f32.mxu0 0.0
    %206 = vmatmul.mubr.f32.gmra.mxu0 %v84
    %v207 = vpop.f32.mrf.mxu0
    %v208 = vadd.f32 0.0, %v207
    %v209 = vpop.f32.mrf.mxu0
    %210 = vmatprep.mubr.f32.mxu0 0.0
    %211 = vmatmul.mubr.f32.gmra.mxu0 %v87
    %v212 = vpop.f32.mrf.mxu0
    %v213 = vadd.f32 0.0, %v212
    %v214 = vpop.f32.mrf.mxu0
    %215 = vmatprep.mubr.f32.mxu0 0.0
    %216 = vmatmul.mubr.f32.gmra.mxu0 %v90
    %v217 = vpop.f32.mrf.mxu0
    %v218 = vadd.f32 0.0, %v217
    %v219 = vpop.f32.mrf.mxu0
    %220 = vmatprep.mubr.f32.mxu0 0.0
    %221 = vmatmul.mubr.f32.gmra.mxu0 %v93
    %v222 = vpop.f32.mrf.mxu0
    %v223 = vadd.f32 0.0, %v222
    %v224 = vpop.f32.mrf.mxu0
    %225 = vmatprep.mubr.f32.mxu0 0.0
    %226 = vmatmul.mubr.f32.gmra.mxu0 %v96
    %v227 = vpop.f32.mrf.mxu0
    %v228 = vadd.f32 0.0, %v227
    %v229 = vpop.f32.mrf.mxu0
    %230 = vmatprep.mubr.f32.mxu0 0.0
    %231 = vmatmul.mubr.f32.gmra.mxu0 %v99
    %v232 = vpop.f32.mrf.mxu0
    %v233 = vadd.f32 0.0, %v232
    %v234 = vpop.f32.mrf.mxu0
    %235 = vmatprep.mubr.f32.mxu0 0.0
    %236 = vmatmul.mubr.f32.gmra.mxu0 %v102
    %v237 = vpop.f32.mrf.mxu0
    %v238 = vadd.f32 0.0, %v237
    %v239 = vpop.f32.mrf.mxu0
    %240 = vmatprep.mubr.f32.mxu0 0.0
    %241 = vmatmul.mubr.f32.gmra.mxu0 %v105
    %v242 = vpop.f32.mrf.mxu0
    %v243 = vadd.f32 0.0, %v242
    %v244 = vpop.f32.mrf.mxu0
    %245 = vmatprep.mubr.f32.mxu0 0.0
    %246 = vmatmul.mubr.f32.gmra.mxu0 %v108
    %v247 = vpop.f32.mrf.mxu0
    %v248 = vadd.f32 0.0, %v247
    %v249 = vpop.f32.mrf.mxu0
    %250 = vmatprep.mubr.f32.mxu0 0.0
    %251 = vmatmul.mubr.f32.gmra.mxu0 %v111
    %v252 = vpop.f32.mrf.mxu0
    %v253 = vadd.f32 0.0, %v252
    %v254 = vpop.f32.mrf.mxu0
    %255 = vmatprep.mubr.f32.mxu0 0.0
    %256 = vmatmul.mubr.f32.gmra.mxu0 %v114
    %v257 = vpop.f32.mrf.mxu0
    %v258 = vadd.f32 0.0, %v257
    %v259 = vpop.f32.mrf.mxu0
    %260 = vdwg.mxu0
    %261 = vmatprep.subr.mxu0 0.0
    %262 = vmatpush1.msra.mxu0 %v258
    %263 = vmatprep.subr.mxu0 0.0
    %264 = vmatpush1.msra.mxu0 %v253
    %265 = vmatprep.subr.mxu0 0.0
    %266 = vmatpush1.msra.mxu0 %v248
    %267 = vmatprep.subr.mxu0 0.0
    %268 = vmatpush1.msra.mxu0 %v243
    %269 = vmatprep.subr.mxu0 0.0
    %270 = vmatpush1.msra.mxu0 %v238
    %271 = vmatprep.subr.mxu0 0.0
    %272 = vmatpush1.msra.mxu0 %v233
    %273 = vmatprep.subr.mxu0 0.0
    %274 = vmatpush1.msra.mxu0 %v228
    %275 = vmatprep.subr.mxu0 0.0
    %276 = vmatpush1.msra.mxu0 %v223
    %277 = vmatprep.subr.mxu0 0.0
    %278 = vmatpush1.msra.mxu0 %v218
    %279 = vmatprep.subr.mxu0 0.0
    %280 = vmatpush1.msra.mxu0 %v213
    %281 = vmatprep.subr.mxu0 0.0
    %282 = vmatpush1.msra.mxu0 %v208
    %283 = vmatprep.subr.mxu0 0.0
    %284 = vmatpush1.msra.mxu0 %v203
    %285 = vmatprep.subr.mxu0 0.0
    %286 = vmatpush1.msra.mxu0 %v198
    %287 = vmatprep.subr.mxu0 0.0
    %288 = vmatpush1.msra.mxu0 %v193
    %289 = vmatprep.subr.mxu0 0.0
    %290 = vmatpush1.msra.mxu0 %v188
    %291 = vmatprep.subr.mxu0 0.0
    %292 = vmatpush1.msra.mxu0 %v183
    %293 = vmatprep.subr.mxu0 0.0
    %294 = vmatpush2.msra.mxu0 0.0
    %295 = vmatprep.subr.mxu0 0.0
    %296 = vmatpush2.msra.mxu0 0.0
    %297 = vmatprep.subr.mxu0 0.0
    %298 = vmatpush2.msra.mxu0 0.0
    %299 = vmatprep.subr.mxu0 0.0
    %300 = vmatpush2.msra.mxu0 0.0
    %301 = vmatprep.subr.mxu0 0.0
    %302 = vmatpush2.msra.mxu0 0.0
    %303 = vmatprep.subr.mxu0 0.0
    %304 = vmatpush2.msra.mxu0 0.0
    %305 = vmatprep.subr.mxu0 0.0
    %306 = vmatpush2.msra.mxu0 0.0
    %307 = vmatprep.subr.mxu0 0.0
    %308 = vmatpush2.msra.mxu0 0.0
    %309 = vmatprep.subr.mxu0 0.0
    %310 = vmatpush2.msra.mxu0 0.0
    %311 = vmatprep.subr.mxu0 0.0
    %312 = vmatpush2.msra.mxu0 0.0
    %313 = vmatprep.subr.mxu0 0.0
    %314 = vmatpush2.msra.mxu0 0.0
    %315 = vmatprep.subr.mxu0 0.0
    %316 = vmatpush2.msra.mxu0 0.0
    %317 = vmatprep.subr.mxu0 0.0
    %318 = vmatpush2.msra.mxu0 0.0
    %319 = vmatprep.subr.mxu0 0.0
    %320 = vmatpush2.msra.mxu0 0.0
    %321 = vmatprep.subr.mxu0 0.0
    %322 = vmatpush2.msra.mxu0 0.0
    %323 = vmatprep.subr.mxu0 0.0
    %324 = vmatpush2.msra.mxu0 0.0
    %325 = vmatprep.mubr.f32.mxu0 0.0
    %326 = vmatmul.mubr.f32.gmra.mxu0 1.0
    %v327 = vpop.f32.mrf.mxu0
    %v328 = vadd.f32 0.0, %v327
    %v329 = vpop.f32.mrf.mxu0
    %330 = vdwg.mxu0
    %v331 = vld [vmem:[%s4] sm:$0xff]
    %v332 = vld [vmem:[%s4 + $0x8] sm:$0xff]
    %v333 = vld [vmem:[%s4 + $0x10] sm:$0xff]
    %v334 = vld [vmem:[%s4 + $0x18] sm:$0xff]
    %vm335 = vcmask 261120
    %v337 = vsel %vm335, %v328, 0
    %339 = vmatprep.subr.mxu0 0.0
    %340 = vmatpush1.msra.mxu0 0.0
    %341 = vmatprep.subr.mxu0 0.0
    %342 = vmatpush1.msra.mxu0 0.0
    %343 = vmatprep.subr.mxu0 0.0
    %344 = vmatpush1.msra.mxu0 0.0
    %345 = vmatprep.subr.mxu0 0.0
    %346 = vmatpush1.msra.mxu0 0.0
    %347 = vmatprep.subr.mxu0 0.0
    %348 = vmatpush1.msra.mxu0 0.0
    %349 = vmatprep.subr.mxu0 0.0
    %350 = vmatpush1.msra.mxu0 0.0
    %351 = vmatprep.subr.mxu0 0.0
    %352 = vmatpush1.msra.mxu0 0.0
    %353 = vmatprep.subr.mxu0 0.0
    %354 = vmatpush1.msra.mxu0 0.0
    %355 = vmatprep.subr.mxu0 0.0
    %356 = vmatpush1.msra.mxu0 0.0
    %357 = vmatprep.subr.mxu0 0.0
    %358 = vmatpush1.msra.mxu0 0.0
    %359 = vmatprep.subr.mxu0 0.0
    %360 = vmatpush1.msra.mxu0 0.0
    %361 = vmatprep.subr.mxu0 0.0
    %362 = vmatpush1.msra.mxu0 0.0
    %363 = vmatprep.subr.mxu0 0.0
    %364 = vmatpush1.msra.mxu0 %v334
    %365 = vmatprep.subr.mxu0 0.0
    %366 = vmatpush1.msra.mxu0 %v333
    %367 = vmatprep.subr.mxu0 0.0
    %368 = vmatpush1.msra.mxu0 %v332
    %369 = vmatprep.subr.mxu0 0.0
    %370 = vmatpush1.msra.mxu0 %v331
    %371 = vmatprep.subr.mxu0 0.0
    %372 = vmatpush2.msra.mxu0 0.0
    %373 = vmatprep.subr.mxu0 0.0
    %374 = vmatpush2.msra.mxu0 0.0
    %375 = vmatprep.subr.mxu0 0.0
    %376 = vmatpush2.msra.mxu0 0.0
    %377 = vmatprep.subr.mxu0 0.0
    %378 = vmatpush2.msra.mxu0 0.0
    %379 = vmatprep.subr.mxu0 0.0
    %380 = vmatpush2.msra.mxu0 0.0
    %381 = vmatprep.subr.mxu0 0.0
    %382 = vmatpush2.msra.mxu0 0.0
    %383 = vmatprep.subr.mxu0 0.0
    %384 = vmatpush2.msra.mxu0 0.0
    %385 = vmatprep.subr.mxu0 0.0
    %386 = vmatpush2.msra.mxu0 0.0
    %387 = vmatprep.subr.mxu0 0.0
    %388 = vmatpush2.msra.mxu0 0.0
    %389 = vmatprep.subr.mxu0 0.0
    %390 = vmatpush2.msra.mxu0 0.0
    %391 = vmatprep.subr.mxu0 0.0
    %392 = vmatpush2.msra.mxu0 0.0
    %393 = vmatprep.subr.mxu0 0.0
    %394 = vmatpush2.msra.mxu0 0.0
    %395 = vmatprep.subr.mxu0 0.0
    %396 = vmatpush2.msra.mxu0 0.0
    %397 = vmatprep.subr.mxu0 0.0
    %398 = vmatpush2.msra.mxu0 0.0
    %399 = vmatprep.subr.mxu0 0.0
    %400 = vmatpush2.msra.mxu0 0.0
    %401 = vmatprep.subr.mxu0 0.0
    %402 = vmatpush2.msra.mxu0 0.0
    %403 = vmatprep.mubr.f32.mxu0 0.0
    %404 = vmatmul.mubr.f32.gmra.mxu0 %v337
    %v405 = vpop.f32.mrf.mxu0
    %v406 = vadd.f32 0.0, %v405
    %v407 = vpop.f32.mrf.mxu0
    %408 = vdwg.mxu0
    %v409 = vmul.f32 %v183, %v183
    %v410 = vmul.f32 %v188, %v188
    %v411 = vmul.f32 %v193, %v193
    %v412 = vmul.f32 %v198, %v198
    %v413 = vmul.f32 %v203, %v203
    %v414 = vmul.f32 %v208, %v208
    %v415 = vmul.f32 %v213, %v213
    %v416 = vmul.f32 %v218, %v218
    %v417 = vmul.f32 %v223, %v223
    %v418 = vmul.f32 %v228, %v228
    %v419 = vmul.f32 %v233, %v233
    %v420 = vmul.f32 %v238, %v238
    %v421 = vmul.f32 %v243, %v243
    %v422 = vmul.f32 %v248, %v248
    %v423 = vmul.f32 %v253, %v253
    %v424 = vmul.f32 %v258, %v258
    %425 = vmatprep.subr.mxu0 0.0
    %426 = vmatpush1.msra.mxu0 %v424
    %427 = vmatprep.subr.mxu0 0.0
    %428 = vmatpush1.msra.mxu0 %v423
    %429 = vmatprep.subr.mxu0 0.0
    %430 = vmatpush1.msra.mxu0 %v422
    %431 = vmatprep.subr.mxu0 0.0
    %432 = vmatpush1.msra.mxu0 %v421
    %433 = vmatprep.subr.mxu0 0.0
    %434 = vmatpush1.msra.mxu0 %v420
    %435 = vmatprep.subr.mxu0 0.0
    %436 = vmatpush1.msra.mxu0 %v419
    %437 = vmatprep.subr.mxu0 0.0
    %438 = vmatpush1.msra.mxu0 %v418
    %439 = vmatprep.subr.mxu0 0.0
    %440 = vmatpush1.msra.mxu0 %v417
    %441 = vmatprep.subr.mxu0 0.0
    %442 = vmatpush1.msra.mxu0 %v416
    %443 = vmatprep.subr.mxu0 0.0
    %444 = vmatpush1.msra.mxu0 %v415
    %445 = vmatprep.subr.mxu0 0.0
    %446 = vmatpush1.msra.mxu0 %v414
    %447 = vmatprep.subr.mxu0 0.0
    %448 = vmatpush1.msra.mxu0 %v413
    %449 = vmatprep.subr.mxu0 0.0
    %450 = vmatpush1.msra.mxu0 %v412
    %451 = vmatprep.subr.mxu0 0.0
    %452 = vmatpush1.msra.mxu0 %v411
    %453 = vmatprep.subr.mxu0 0.0
    %454 = vmatpush1.msra.mxu0 %v410
    %455 = vmatprep.subr.mxu0 0.0
    %456 = vmatpush1.msra.mxu0 %v409
    %457 = vmatprep.subr.mxu0 0.0
    %458 = vmatpush2.msra.mxu0 0.0
    %459 = vmatprep.subr.mxu0 0.0
    %460 = vmatpush2.msra.mxu0 0.0
    %461 = vmatprep.subr.mxu0 0.0
    %462 = vmatpush2.msra.mxu0 0.0
    %463 = vmatprep.subr.mxu0 0.0
    %464 = vmatpush2.msra.mxu0 0.0
    %465 = vmatprep.subr.mxu0 0.0
    %466 = vmatpush2.msra.mxu0 0.0
    %467 = vmatprep.subr.mxu0 0.0
    %468 = vmatpush2.msra.mxu0 0.0
    %469 = vmatprep.subr.mxu0 0.0
    %470 = vmatpush2.msra.mxu0 0.0
    %471 = vmatprep.subr.mxu0 0.0
    %472 = vmatpush2.msra.mxu0 0.0
    %473 = vmatprep.subr.mxu0 0.0
    %474 = vmatpush2.msra.mxu0 0.0
    %475 = vmatprep.subr.mxu0 0.0
    %476 = vmatpush2.msra.mxu0 0.0
    %477 = vmatprep.subr.mxu0 0.0
    %478 = vmatpush2.msra.mxu0 0.0
    %479 = vmatprep.subr.mxu0 0.0
    %480 = vmatpush2.msra.mxu0 0.0
    %481 = vmatprep.subr.mxu0 0.0
    %482 = vmatpush2.msra.mxu0 0.0
    %483 = vmatprep.subr.mxu0 0.0
    %484 = vmatpush2.msra.mxu0 0.0
    %485 = vmatprep.subr.mxu0 0.0
    %486 = vmatpush2.msra.mxu0 0.0
    %487 = vmatprep.subr.mxu0 0.0
    %488 = vmatpush2.msra.mxu0 0.0
    %489 = vmatprep.mubr.f32.mxu0 0.0
    %490 = vmatmul.mubr.f32.gmra.mxu0 1.0
    %v491 = vpop.f32.mrf.mxu0
    %v492 = vadd.f32 0.0, %v491
    %v493 = vpop.f32.mrf.mxu0
    %494 = vdwg.mxu0
    %v496 = vsel %vm335, %v492, 0
    %498 = vmatprep.subr.mxu0 0.0
    %499 = vmatpush1.msra.mxu0 0.0
    %500 = vmatprep.subr.mxu0 0.0
    %501 = vmatpush1.msra.mxu0 0.0
    %502 = vmatprep.subr.mxu0 0.0
    %503 = vmatpush1.msra.mxu0 0.0
    %504 = vmatprep.subr.mxu0 0.0
    %505 = vmatpush1.msra.mxu0 0.0
    %506 = vmatprep.subr.mxu0 0.0
    %507 = vmatpush1.msra.mxu0 0.0
    %508 = vmatprep.subr.mxu0 0.0
    %509 = vmatpush1.msra.mxu0 0.0
    %510 = vmatprep.subr.mxu0 0.0
    %511 = vmatpush1.msra.mxu0 0.0
    %512 = vmatprep.subr.mxu0 0.0
    %513 = vmatpush1.msra.mxu0 0.0
    %514 = vmatprep.subr.mxu0 0.0
    %515 = vmatpush1.msra.mxu0 0.0
    %516 = vmatprep.subr.mxu0 0.0
    %517 = vmatpush1.msra.mxu0 0.0
    %518 = vmatprep.subr.mxu0 0.0
    %519 = vmatpush1.msra.mxu0 0.0
    %520 = vmatprep.subr.mxu0 0.0
    %521 = vmatpush1.msra.mxu0 0.0
    %522 = vmatprep.subr.mxu0 0.0
    %523 = vmatpush1.msra.mxu0 %v334
    %524 = vmatprep.subr.mxu0 0.0
    %525 = vmatpush1.msra.mxu0 %v333
    %526 = vmatprep.subr.mxu0 0.0
    %527 = vmatpush1.msra.mxu0 %v332
    %528 = vmatprep.subr.mxu0 0.0
    %529 = vmatpush1.msra.mxu0 %v331
    %530 = vmatprep.subr.mxu0 0.0
    %531 = vmatpush2.msra.mxu0 0.0
    %532 = vmatprep.subr.mxu0 0.0
    %533 = vmatpush2.msra.mxu0 0.0
    %534 = vmatprep.subr.mxu0 0.0
    %535 = vmatpush2.msra.mxu0 0.0
    %536 = vmatprep.subr.mxu0 0.0
    %537 = vmatpush2.msra.mxu0 0.0
    %538 = vmatprep.subr.mxu0 0.0
    %539 = vmatpush2.msra.mxu0 0.0
    %540 = vmatprep.subr.mxu0 0.0
    %541 = vmatpush2.msra.mxu0 0.0
    %542 = vmatprep.subr.mxu0 0.0
    %543 = vmatpush2.msra.mxu0 0.0
    %544 = vmatprep.subr.mxu0 0.0
    %545 = vmatpush2.msra.mxu0 0.0
    %546 = vmatprep.subr.mxu0 0.0
    %547 = vmatpush2.msra.mxu0 0.0
    %548 = vmatprep.subr.mxu0 0.0
    %549 = vmatpush2.msra.mxu0 0.0
    %550 = vmatprep.subr.mxu0 0.0
    %551 = vmatpush2.msra.mxu0 0.0
    %552 = vmatprep.subr.mxu0 0.0
    %553 = vmatpush2.msra.mxu0 0.0
    %554 = vmatprep.subr.mxu0 0.0
    %555 = vmatpush2.msra.mxu0 0.0
    %556 = vmatprep.subr.mxu0 0.0
    %557 = vmatpush2.msra.mxu0 0.0
    %558 = vmatprep.subr.mxu0 0.0
    %559 = vmatpush2.msra.mxu0 0.0
    %560 = vmatprep.subr.mxu0 0.0
    %561 = vmatpush2.msra.mxu0 0.0
    %562 = vmatprep.mubr.f32.mxu0 0.0
    %563 = vmatmul.mubr.f32.gmra.mxu0 %v496
    %v564 = vpop.f32.mrf.mxu0
    %v565 = vadd.f32 0.0, %v564
    %v566 = vpop.f32.mrf.mxu0
    %567 = vdwg.mxu0
    %v568 = vmul.f32 %v406, 0.001953125
    %v569 = vmul.f32 %v565, 0.001953125
    %v570 = vmul.f32 %v568, %v568
    %v571 = vsub.f32 %v569, %v570
    %v572 = vmax.f32 %v571, 0.0
    %v573 = vadd.f32 %v572, 1e-05
    %v574 = vrsqrt.pop %v573
    %v575 = vld [vmem:[%s2] sm:$0x1]
    %v576 = vmul.f32 %v574, %v575
    %v577 = vld [vmem:[%s3] sm:$0x1]
    %v578 = vmul.f32 %v568, %v576
    %v579 = vsub.f32 %v577, %v578
    %v580 = vld [vmem:[%s5] sm:$0xff]
    %vm581 = vcmask 64512
    %v583 = vsel %vm581, %v576, 0
    %585 = vmatprep.subr.mxu0 0.0
    %586 = vmatpush1.msra.mxu0 0.0
    %587 = vmatprep.subr.mxu0 0.0
    %588 = vmatpush1.msra.mxu0 0.0
    %589 = vmatprep.subr.mxu0 0.0
    %590 = vmatpush1.msra.mxu0 0.0
    %591 = vmatprep.subr.mxu0 0.0
    %592 = vmatpush1.msra.mxu0 0.0
    %593 = vmatprep.subr.mxu0 0.0
    %594 = vmatpush1.msra.mxu0 0.0
    %595 = vmatprep.subr.mxu0 0.0
    %596 = vmatpush1.msra.mxu0 0.0
    %597 = vmatprep.subr.mxu0 0.0
    %598 = vmatpush1.msra.mxu0 0.0
    %599 = vmatprep.subr.mxu0 0.0
    %600 = vmatpush1.msra.mxu0 0.0
    %601 = vmatprep.subr.mxu0 0.0
    %602 = vmatpush1.msra.mxu0 0.0
    %603 = vmatprep.subr.mxu0 0.0
    %604 = vmatpush1.msra.mxu0 0.0
    %605 = vmatprep.subr.mxu0 0.0
    %606 = vmatpush1.msra.mxu0 0.0
    %607 = vmatprep.subr.mxu0 0.0
    %608 = vmatpush1.msra.mxu0 0.0
    %609 = vmatprep.subr.mxu0 0.0
    %610 = vmatpush1.msra.mxu0 0.0
    %611 = vmatprep.subr.mxu0 0.0
    %612 = vmatpush1.msra.mxu0 0.0
    %613 = vmatprep.subr.mxu0 0.0
    %614 = vmatpush1.msra.mxu0 0.0
    %615 = vmatprep.subr.mxu0 0.0
    %616 = vmatpush1.msra.mxu0 %v580
    %617 = vmatprep.subr.mxu0 0.0
    %618 = vmatpush2.msra.mxu0 0.0
    %619 = vmatprep.subr.mxu0 0.0
    %620 = vmatpush2.msra.mxu0 0.0
    %621 = vmatprep.subr.mxu0 0.0
    %622 = vmatpush2.msra.mxu0 0.0
    %623 = vmatprep.subr.mxu0 0.0
    %624 = vmatpush2.msra.mxu0 0.0
    %625 = vmatprep.subr.mxu0 0.0
    %626 = vmatpush2.msra.mxu0 0.0
    %627 = vmatprep.subr.mxu0 0.0
    %628 = vmatpush2.msra.mxu0 0.0
    %629 = vmatprep.subr.mxu0 0.0
    %630 = vmatpush2.msra.mxu0 0.0
    %631 = vmatprep.subr.mxu0 0.0
    %632 = vmatpush2.msra.mxu0 0.0
    %633 = vmatprep.subr.mxu0 0.0
    %634 = vmatpush2.msra.mxu0 0.0
    %635 = vmatprep.subr.mxu0 0.0
    %636 = vmatpush2.msra.mxu0 0.0
    %637 = vmatprep.subr.mxu0 0.0
    %638 = vmatpush2.msra.mxu0 0.0
    %639 = vmatprep.subr.mxu0 0.0
    %640 = vmatpush2.msra.mxu0 0.0
    %641 = vmatprep.subr.mxu0 0.0
    %642 = vmatpush2.msra.mxu0 0.0
    %643 = vmatprep.subr.mxu0 0.0
    %644 = vmatpush2.msra.mxu0 0.0
    %645 = vmatprep.subr.mxu0 0.0
    %646 = vmatpush2.msra.mxu0 0.0
    %647 = vmatprep.subr.mxu0 0.0
    %648 = vmatpush2.msra.mxu0 0.0
    %649 = vmatprep.mubr.f32.mxu0 0.0
    %650 = vmatmul.mubr.f32.gmra.mxu0 %v583
    %v651 = vpop.f32.mrf.mxu0
    %v652 = vadd.f32 0.0, %v651
    %v653 = vpop.f32.mrf.mxu0
    %654 = vdwg.mxu0
    %v656 = vsel %vm581, %v579, 0
    %658 = vmatprep.subr.mxu0 0.0
    %659 = vmatpush1.msra.mxu0 0.0
    %660 = vmatprep.subr.mxu0 0.0
    %661 = vmatpush1.msra.mxu0 0.0
    %662 = vmatprep.subr.mxu0 0.0
    %663 = vmatpush1.msra.mxu0 0.0
    %664 = vmatprep.subr.mxu0 0.0
    %665 = vmatpush1.msra.mxu0 0.0
    %666 = vmatprep.subr.mxu0 0.0
    %667 = vmatpush1.msra.mxu0 0.0
    %668 = vmatprep.subr.mxu0 0.0
    %669 = vmatpush1.msra.mxu0 0.0
    %670 = vmatprep.subr.mxu0 0.0
    %671 = vmatpush1.msra.mxu0 0.0
    %672 = vmatprep.subr.mxu0 0.0
    %673 = vmatpush1.msra.mxu0 0.0
    %674 = vmatprep.subr.mxu0 0.0
    %675 = vmatpush1.msra.mxu0 0.0
    %676 = vmatprep.subr.mxu0 0.0
    %677 = vmatpush1.msra.mxu0 0.0
    %678 = vmatprep.subr.mxu0 0.0
    %679 = vmatpush1.msra.mxu0 0.0
    %680 = vmatprep.subr.mxu0 0.0
    %681 = vmatpush1.msra.mxu0 0.0
    %682 = vmatprep.subr.mxu0 0.0
    %683 = vmatpush1.msra.mxu0 0.0
    %684 = vmatprep.subr.mxu0 0.0
    %685 = vmatpush1.msra.mxu0 0.0
    %686 = vmatprep.subr.mxu0 0.0
    %687 = vmatpush1.msra.mxu0 0.0
    %688 = vmatprep.subr.mxu0 0.0
    %689 = vmatpush1.msra.mxu0 %v580
    %690 = vmatprep.subr.mxu0 0.0
    %691 = vmatpush2.msra.mxu0 0.0
    %692 = vmatprep.subr.mxu0 0.0
    %693 = vmatpush2.msra.mxu0 0.0
    %694 = vmatprep.subr.mxu0 0.0
    %695 = vmatpush2.msra.mxu0 0.0
    %696 = vmatprep.subr.mxu0 0.0
    %697 = vmatpush2.msra.mxu0 0.0
    %698 = vmatprep.subr.mxu0 0.0
    %699 = vmatpush2.msra.mxu0 0.0
    %700 = vmatprep.subr.mxu0 0.0
    %701 = vmatpush2.msra.mxu0 0.0
    %702 = vmatprep.subr.mxu0 0.0
    %703 = vmatpush2.msra.mxu0 0.0
    %704 = vmatprep.subr.mxu0 0.0
    %705 = vmatpush2.msra.mxu0 0.0
    %706 = vmatprep.subr.mxu0 0.0
    %707 = vmatpush2.msra.mxu0 0.0
    %708 = vmatprep.subr.mxu0 0.0
    %709 = vmatpush2.msra.mxu0 0.0
    %710 = vmatprep.subr.mxu0 0.0
    %711 = vmatpush2.msra.mxu0 0.0
    %712 = vmatprep.subr.mxu0 0.0
    %713 = vmatpush2.msra.mxu0 0.0
    %714 = vmatprep.subr.mxu0 0.0
    %715 = vmatpush2.msra.mxu0 0.0
    %716 = vmatprep.subr.mxu0 0.0
    %717 = vmatpush2.msra.mxu0 0.0
    %718 = vmatprep.subr.mxu0 0.0
    %719 = vmatpush2.msra.mxu0 0.0
    %720 = vmatprep.subr.mxu0 0.0
    %721 = vmatpush2.msra.mxu0 0.0
    %722 = vmatprep.mubr.f32.mxu0 0.0
    %723 = vmatmul.mubr.f32.gmra.mxu0 %v656
    %v724 = vpop.f32.mrf.mxu0
    %v725 = vadd.f32 0.0, %v724
    %v726 = vpop.f32.mrf.mxu0
    %727 = vdwg.mxu0
    %v728 = vlaneseq
    %v729 = vshrl.u32 %v728, 7
    %v730 = vsub.s32 0, %v729
    %v731 = vrot.slane %v652, %v730
    %v732 = vmul.f32 %v183, %v731
    %v733 = vmul.f32 %v188, %v731
    %v734 = vmul.f32 %v193, %v731
    %v735 = vmul.f32 %v198, %v731
    %v736 = vmul.f32 %v203, %v731
    %v737 = vmul.f32 %v208, %v731
    %v738 = vmul.f32 %v213, %v731
    %v739 = vmul.f32 %v218, %v731
    %v740 = vmul.f32 %v223, %v731
    %v741 = vmul.f32 %v228, %v731
    %v742 = vmul.f32 %v233, %v731
    %v743 = vmul.f32 %v238, %v731
    %v744 = vmul.f32 %v243, %v731
    %v745 = vmul.f32 %v248, %v731
    %v746 = vmul.f32 %v253, %v731
    %v747 = vmul.f32 %v258, %v731
    %v748 = vlaneseq
    %v749 = vshrl.u32 %v748, 7
    %v750 = vsub.s32 0, %v749
    %v751 = vrot.slane %v725, %v750
    %v752 = vadd.f32 %v732, %v751
    %v753 = vadd.f32 %v733, %v751
    %v754 = vadd.f32 %v734, %v751
    %v755 = vadd.f32 %v735, %v751
    %v756 = vadd.f32 %v736, %v751
    %v757 = vadd.f32 %v737, %v751
    %v758 = vadd.f32 %v738, %v751
    %v759 = vadd.f32 %v739, %v751
    %v760 = vadd.f32 %v740, %v751
    %v761 = vadd.f32 %v741, %v751
    %v762 = vadd.f32 %v742, %v751
    %v763 = vadd.f32 %v743, %v751
    %v764 = vadd.f32 %v744, %v751
    %v765 = vadd.f32 %v745, %v751
    %v766 = vadd.f32 %v746, %v751
    %v767 = vadd.f32 %v747, %v751
    %v768 = vmax.f32 %v752, 0.0
    %v769 = vmax.f32 %v753, 0.0
    %v770 = vmax.f32 %v754, 0.0
    %v771 = vmax.f32 %v755, 0.0
    %v772 = vmax.f32 %v756, 0.0
    %v773 = vmax.f32 %v757, 0.0
    %v774 = vmax.f32 %v758, 0.0
    %v775 = vmax.f32 %v759, 0.0
    %v776 = vmax.f32 %v760, 0.0
    %v777 = vmax.f32 %v761, 0.0
    %v778 = vmax.f32 %v762, 0.0
    %v779 = vmax.f32 %v763, 0.0
    %v780 = vmax.f32 %v764, 0.0
    %v781 = vmax.f32 %v765, 0.0
    %v782 = vmax.f32 %v766, 0.0
    %v783 = vmax.f32 %v767, 0.0
    %v784 = vld [vmem:[%s6] sm:$0xff]
    %v785 = vld [vmem:[%s6 + $0x8] sm:$0xff]
    %v786 = vld [vmem:[%s6 + $0x10] sm:$0xff]
    %v787 = vld [vmem:[%s6 + $0x18] sm:$0xff]
    %v788 = vld [vmem:[%s7] sm:$0x1]
    %v790 = vlaneseq
    %v791 = vshrl.u32 %v790, 7
    %v792 = vsub.s32 0, %v791
    %v793 = vrot.slane %v788, %v792
    %v796 = vsel %vm335, %v768, 0
    %v799 = vsel %vm335, %v769, 0
    %v802 = vsel %vm335, %v770, 0
    %v805 = vsel %vm335, %v771, 0
    %v808 = vsel %vm335, %v772, 0
    %v811 = vsel %vm335, %v773, 0
    %v814 = vsel %vm335, %v774, 0
    %v817 = vsel %vm335, %v775, 0
    %v820 = vsel %vm335, %v776, 0
    %v823 = vsel %vm335, %v777, 0
    %v826 = vsel %vm335, %v778, 0
    %v829 = vsel %vm335, %v779, 0
    %v832 = vsel %vm335, %v780, 0
    %v835 = vsel %vm335, %v781, 0
    %v838 = vsel %vm335, %v782, 0
    %v841 = vsel %vm335, %v783, 0
    %843 = vmatprep.subr.mxu0 0.0
    %844 = vmatpush1.msra.mxu0 0.0
    %845 = vmatprep.subr.mxu0 0.0
    %846 = vmatpush1.msra.mxu0 0.0
    %847 = vmatprep.subr.mxu0 0.0
    %848 = vmatpush1.msra.mxu0 0.0
    %849 = vmatprep.subr.mxu0 0.0
    %850 = vmatpush1.msra.mxu0 0.0
    %851 = vmatprep.subr.mxu0 0.0
    %852 = vmatpush1.msra.mxu0 0.0
    %853 = vmatprep.subr.mxu0 0.0
    %854 = vmatpush1.msra.mxu0 0.0
    %855 = vmatprep.subr.mxu0 0.0
    %856 = vmatpush1.msra.mxu0 0.0
    %857 = vmatprep.subr.mxu0 0.0
    %858 = vmatpush1.msra.mxu0 0.0
    %859 = vmatprep.subr.mxu0 0.0
    %860 = vmatpush1.msra.mxu0 0.0
    %861 = vmatprep.subr.mxu0 0.0
    %862 = vmatpush1.msra.mxu0 0.0
    %863 = vmatprep.subr.mxu0 0.0
    %864 = vmatpush1.msra.mxu0 0.0
    %865 = vmatprep.subr.mxu0 0.0
    %866 = vmatpush1.msra.mxu0 0.0
    %867 = vmatprep.subr.mxu0 0.0
    %868 = vmatpush1.msra.mxu0 %v787
    %869 = vmatprep.subr.mxu0 0.0
    %870 = vmatpush1.msra.mxu0 %v786
    %871 = vmatprep.subr.mxu0 0.0
    %872 = vmatpush1.msra.mxu0 %v785
    %873 = vmatprep.subr.mxu0 0.0
    %874 = vmatpush1.msra.mxu0 %v784
    %875 = vmatprep.subr.mxu0 0.0
    %876 = vmatpush2.msra.mxu0 0.0
    %877 = vmatprep.subr.mxu0 0.0
    %878 = vmatpush2.msra.mxu0 0.0
    %879 = vmatprep.subr.mxu0 0.0
    %880 = vmatpush2.msra.mxu0 0.0
    %881 = vmatprep.subr.mxu0 0.0
    %882 = vmatpush2.msra.mxu0 0.0
    %883 = vmatprep.subr.mxu0 0.0
    %884 = vmatpush2.msra.mxu0 0.0
    %885 = vmatprep.subr.mxu0 0.0
    %886 = vmatpush2.msra.mxu0 0.0
    %887 = vmatprep.subr.mxu0 0.0
    %888 = vmatpush2.msra.mxu0 0.0
    %889 = vmatprep.subr.mxu0 0.0
    %890 = vmatpush2.msra.mxu0 0.0
    %891 = vmatprep.subr.mxu0 0.0
    %892 = vmatpush2.msra.mxu0 0.0
    %893 = vmatprep.subr.mxu0 0.0
    %894 = vmatpush2.msra.mxu0 0.0
    %895 = vmatprep.subr.mxu0 0.0
    %896 = vmatpush2.msra.mxu0 0.0
    %897 = vmatprep.subr.mxu0 0.0
    %898 = vmatpush2.msra.mxu0 0.0
    %899 = vmatprep.subr.mxu0 0.0
    %900 = vmatpush2.msra.mxu0 0.0
    %901 = vmatprep.subr.mxu0 0.0
    %902 = vmatpush2.msra.mxu0 0.0
    %903 = vmatprep.subr.mxu0 0.0
    %904 = vmatpush2.msra.mxu0 0.0
    %905 = vmatprep.subr.mxu0 0.0
    %906 = vmatpush2.msra.mxu0 0.0
    %907 = vmatprep.mubr.f32.mxu0 0.0
    %908 = vmatmul.mubr.f32.gmra.mxu0 %v796
    %v909 = vpop.f32.mrf.mxu0
    %v910 = vadd.f32 %v793, %v909
    %v911 = vpop.f32.mrf.mxu0
    %912 = vmatprep.mubr.f32.mxu0 0.0
    %913 = vmatmul.mubr.f32.gmra.mxu0 %v799
    %v914 = vpop.f32.mrf.mxu0
    %v915 = vadd.f32 %v793, %v914
    %v916 = vpop.f32.mrf.mxu0
    %917 = vmatprep.mubr.f32.mxu0 0.0
    %918 = vmatmul.mubr.f32.gmra.mxu0 %v802
    %v919 = vpop.f32.mrf.mxu0
    %v920 = vadd.f32 %v793, %v919
    %v921 = vpop.f32.mrf.mxu0
    %922 = vmatprep.mubr.f32.mxu0 0.0
    %923 = vmatmul.mubr.f32.gmra.mxu0 %v805
    %v924 = vpop.f32.mrf.mxu0
    %v925 = vadd.f32 %v793, %v924
    %v926 = vpop.f32.mrf.mxu0
    %927 = vmatprep.mubr.f32.mxu0 0.0
    %928 = vmatmul.mubr.f32.gmra.mxu0 %v808
    %v929 = vpop.f32.mrf.mxu0
    %v930 = vadd.f32 %v793, %v929
    %v931 = vpop.f32.mrf.mxu0
    %932 = vmatprep.mubr.f32.mxu0 0.0
    %933 = vmatmul.mubr.f32.gmra.mxu0 %v811
    %v934 = vpop.f32.mrf.mxu0
    %v935 = vadd.f32 %v793, %v934
    %v936 = vpop.f32.mrf.mxu0
    %937 = vmatprep.mubr.f32.mxu0 0.0
    %938 = vmatmul.mubr.f32.gmra.mxu0 %v814
    %v939 = vpop.f32.mrf.mxu0
    %v940 = vadd.f32 %v793, %v939
    %v941 = vpop.f32.mrf.mxu0
    %942 = vmatprep.mubr.f32.mxu0 0.0
    %943 = vmatmul.mubr.f32.gmra.mxu0 %v817
    %v944 = vpop.f32.mrf.mxu0
    %v945 = vadd.f32 %v793, %v944
    %v946 = vpop.f32.mrf.mxu0
    %947 = vmatprep.mubr.f32.mxu0 0.0
    %948 = vmatmul.mubr.f32.gmra.mxu0 %v820
    %v949 = vpop.f32.mrf.mxu0
    %v950 = vadd.f32 %v793, %v949
    %v951 = vpop.f32.mrf.mxu0
    %952 = vmatprep.mubr.f32.mxu0 0.0
    %953 = vmatmul.mubr.f32.gmra.mxu0 %v823
    %v954 = vpop.f32.mrf.mxu0
    %v955 = vadd.f32 %v793, %v954
    %v956 = vpop.f32.mrf.mxu0
    %957 = vmatprep.mubr.f32.mxu0 0.0
    %958 = vmatmul.mubr.f32.gmra.mxu0 %v826
    %v959 = vpop.f32.mrf.mxu0
    %v960 = vadd.f32 %v793, %v959
    %v961 = vpop.f32.mrf.mxu0
    %962 = vmatprep.mubr.f32.mxu0 0.0
    %963 = vmatmul.mubr.f32.gmra.mxu0 %v829
    %v964 = vpop.f32.mrf.mxu0
    %v965 = vadd.f32 %v793, %v964
    %v966 = vpop.f32.mrf.mxu0
    %967 = vmatprep.mubr.f32.mxu0 0.0
    %968 = vmatmul.mubr.f32.gmra.mxu0 %v832
    %v969 = vpop.f32.mrf.mxu0
    %v970 = vadd.f32 %v793, %v969
    %v971 = vpop.f32.mrf.mxu0
    %972 = vmatprep.mubr.f32.mxu0 0.0
    %973 = vmatmul.mubr.f32.gmra.mxu0 %v835
    %v974 = vpop.f32.mrf.mxu0
    %v975 = vadd.f32 %v793, %v974
    %v976 = vpop.f32.mrf.mxu0
    %977 = vmatprep.mubr.f32.mxu0 0.0
    %978 = vmatmul.mubr.f32.gmra.mxu0 %v838
    %v979 = vpop.f32.mrf.mxu0
    %v980 = vadd.f32 %v793, %v979
    %v981 = vpop.f32.mrf.mxu0
    %982 = vmatprep.mubr.f32.mxu0 0.0
    %983 = vmatmul.mubr.f32.gmra.mxu0 %v841
    %v984 = vpop.f32.mrf.mxu0
    %v985 = vadd.f32 %v793, %v984
    %v986 = vpop.f32.mrf.mxu0
    %987 = vdwg.mxu0
    %v988 = vmax.f32 %v910, 0.0
    %v989 = vmax.f32 %v915, 0.0
    %v990 = vmax.f32 %v920, 0.0
    %v991 = vmax.f32 %v925, 0.0
    %v992 = vmax.f32 %v930, 0.0
    %v993 = vmax.f32 %v935, 0.0
    %v994 = vmax.f32 %v940, 0.0
    %v995 = vmax.f32 %v945, 0.0
    %v996 = vmax.f32 %v950, 0.0
    %v997 = vmax.f32 %v955, 0.0
    %v998 = vmax.f32 %v960, 0.0
    %v999 = vmax.f32 %v965, 0.0
    %v1000 = vmax.f32 %v970, 0.0
    %v1001 = vmax.f32 %v975, 0.0
    %v1002 = vmax.f32 %v980, 0.0
    %v1003 = vmax.f32 %v985, 0.0
    %1004 = vmatprep.subr.mxu0 0.0
    %1005 = vmatpush1.msra.mxu0 %v1003
    %1006 = vmatprep.subr.mxu0 0.0
    %1007 = vmatpush1.msra.mxu0 %v1002
    %1008 = vmatprep.subr.mxu0 0.0
    %1009 = vmatpush1.msra.mxu0 %v1001
    %1010 = vmatprep.subr.mxu0 0.0
    %1011 = vmatpush1.msra.mxu0 %v1000
    %1012 = vmatprep.subr.mxu0 0.0
    %1013 = vmatpush1.msra.mxu0 %v999
    %1014 = vmatprep.subr.mxu0 0.0
    %1015 = vmatpush1.msra.mxu0 %v998
    %1016 = vmatprep.subr.mxu0 0.0
    %1017 = vmatpush1.msra.mxu0 %v997
    %1018 = vmatprep.subr.mxu0 0.0
    %1019 = vmatpush1.msra.mxu0 %v996
    %1020 = vmatprep.subr.mxu0 0.0
    %1021 = vmatpush1.msra.mxu0 %v995
    %1022 = vmatprep.subr.mxu0 0.0
    %1023 = vmatpush1.msra.mxu0 %v994
    %1024 = vmatprep.subr.mxu0 0.0
    %1025 = vmatpush1.msra.mxu0 %v993
    %1026 = vmatprep.subr.mxu0 0.0
    %1027 = vmatpush1.msra.mxu0 %v992
    %1028 = vmatprep.subr.mxu0 0.0
    %1029 = vmatpush1.msra.mxu0 %v991
    %1030 = vmatprep.subr.mxu0 0.0
    %1031 = vmatpush1.msra.mxu0 %v990
    %1032 = vmatprep.subr.mxu0 0.0
    %1033 = vmatpush1.msra.mxu0 %v989
    %1034 = vmatprep.subr.mxu0 0.0
    %1035 = vmatpush1.msra.mxu0 %v988
    %1036 = vmatprep.subr.mxu0 0.0
    %1037 = vmatpush2.msra.mxu0 0.0
    %1038 = vmatprep.subr.mxu0 0.0
    %1039 = vmatpush2.msra.mxu0 0.0
    %1040 = vmatprep.subr.mxu0 0.0
    %1041 = vmatpush2.msra.mxu0 0.0
    %1042 = vmatprep.subr.mxu0 0.0
    %1043 = vmatpush2.msra.mxu0 0.0
    %1044 = vmatprep.subr.mxu0 0.0
    %1045 = vmatpush2.msra.mxu0 0.0
    %1046 = vmatprep.subr.mxu0 0.0
    %1047 = vmatpush2.msra.mxu0 0.0
    %1048 = vmatprep.subr.mxu0 0.0
    %1049 = vmatpush2.msra.mxu0 0.0
    %1050 = vmatprep.subr.mxu0 0.0
    %1051 = vmatpush2.msra.mxu0 0.0
    %1052 = vmatprep.subr.mxu0 0.0
    %1053 = vmatpush2.msra.mxu0 0.0
    %1054 = vmatprep.subr.mxu0 0.0
    %1055 = vmatpush2.msra.mxu0 0.0
    %1056 = vmatprep.subr.mxu0 0.0
    %1057 = vmatpush2.msra.mxu0 0.0
    %1058 = vmatprep.subr.mxu0 0.0
    %1059 = vmatpush2.msra.mxu0 0.0
    %1060 = vmatprep.subr.mxu0 0.0
    %1061 = vmatpush2.msra.mxu0 0.0
    %1062 = vmatprep.subr.mxu0 0.0
    %1063 = vmatpush2.msra.mxu0 0.0
    %1064 = vmatprep.subr.mxu0 0.0
    %1065 = vmatpush2.msra.mxu0 0.0
    %1066 = vmatprep.subr.mxu0 0.0
    %1067 = vmatpush2.msra.mxu0 0.0
    %1068 = vmatprep.mubr.f32.mxu0 0.0
    %1069 = vmatmul.mubr.f32.gmra.mxu0 1.0
    %v1070 = vpop.f32.mrf.mxu0
    %v1071 = vadd.f32 0.0, %v1070
    %v1072 = vpop.f32.mrf.mxu0
    %1073 = vdwg.mxu0
    %v1074 = vmul.f32 %v1071, 0.0078125
    %v1075 = vmul.f32 %v988, %v988
    %v1076 = vmul.f32 %v989, %v989
    %v1077 = vmul.f32 %v990, %v990
    %v1078 = vmul.f32 %v991, %v991
    %v1079 = vmul.f32 %v992, %v992
    %v1080 = vmul.f32 %v993, %v993
    %v1081 = vmul.f32 %v994, %v994
    %v1082 = vmul.f32 %v995, %v995
    %v1083 = vmul.f32 %v996, %v996
    %v1084 = vmul.f32 %v997, %v997
    %v1085 = vmul.f32 %v998, %v998
    %v1086 = vmul.f32 %v999, %v999
    %v1087 = vmul.f32 %v1000, %v1000
    %v1088 = vmul.f32 %v1001, %v1001
    %v1089 = vmul.f32 %v1002, %v1002
    %v1090 = vmul.f32 %v1003, %v1003
    %1091 = vmatprep.subr.mxu0 0.0
    %1092 = vmatpush1.msra.mxu0 %v1090
    %1093 = vmatprep.subr.mxu0 0.0
    %1094 = vmatpush1.msra.mxu0 %v1089
    %1095 = vmatprep.subr.mxu0 0.0
    %1096 = vmatpush1.msra.mxu0 %v1088
    %1097 = vmatprep.subr.mxu0 0.0
    %1098 = vmatpush1.msra.mxu0 %v1087
    %1099 = vmatprep.subr.mxu0 0.0
    %1100 = vmatpush1.msra.mxu0 %v1086
    %1101 = vmatprep.subr.mxu0 0.0
    %1102 = vmatpush1.msra.mxu0 %v1085
    %1103 = vmatprep.subr.mxu0 0.0
    %1104 = vmatpush1.msra.mxu0 %v1084
    %1105 = vmatprep.subr.mxu0 0.0
    %1106 = vmatpush1.msra.mxu0 %v1083
    %1107 = vmatprep.subr.mxu0 0.0
    %1108 = vmatpush1.msra.mxu0 %v1082
    %1109 = vmatprep.subr.mxu0 0.0
    %1110 = vmatpush1.msra.mxu0 %v1081
    %1111 = vmatprep.subr.mxu0 0.0
    %1112 = vmatpush1.msra.mxu0 %v1080
    %1113 = vmatprep.subr.mxu0 0.0
    %1114 = vmatpush1.msra.mxu0 %v1079
    %1115 = vmatprep.subr.mxu0 0.0
    %1116 = vmatpush1.msra.mxu0 %v1078
    %1117 = vmatprep.subr.mxu0 0.0
    %1118 = vmatpush1.msra.mxu0 %v1077
    %1119 = vmatprep.subr.mxu0 0.0
    %1120 = vmatpush1.msra.mxu0 %v1076
    %1121 = vmatprep.subr.mxu0 0.0
    %1122 = vmatpush1.msra.mxu0 %v1075
    %1123 = vmatprep.subr.mxu0 0.0
    %1124 = vmatpush2.msra.mxu0 0.0
    %1125 = vmatprep.subr.mxu0 0.0
    %1126 = vmatpush2.msra.mxu0 0.0
    %1127 = vmatprep.subr.mxu0 0.0
    %1128 = vmatpush2.msra.mxu0 0.0
    %1129 = vmatprep.subr.mxu0 0.0
    %1130 = vmatpush2.msra.mxu0 0.0
    %1131 = vmatprep.subr.mxu0 0.0
    %1132 = vmatpush2.msra.mxu0 0.0
    %1133 = vmatprep.subr.mxu0 0.0
    %1134 = vmatpush2.msra.mxu0 0.0
    %1135 = vmatprep.subr.mxu0 0.0
    %1136 = vmatpush2.msra.mxu0 0.0
    %1137 = vmatprep.subr.mxu0 0.0
    %1138 = vmatpush2.msra.mxu0 0.0
    %1139 = vmatprep.subr.mxu0 0.0
    %1140 = vmatpush2.msra.mxu0 0.0
    %1141 = vmatprep.subr.mxu0 0.0
    %1142 = vmatpush2.msra.mxu0 0.0
    %1143 = vmatprep.subr.mxu0 0.0
    %1144 = vmatpush2.msra.mxu0 0.0
    %1145 = vmatprep.subr.mxu0 0.0
    %1146 = vmatpush2.msra.mxu0 0.0
    %1147 = vmatprep.subr.mxu0 0.0
    %1148 = vmatpush2.msra.mxu0 0.0
    %1149 = vmatprep.subr.mxu0 0.0
    %1150 = vmatpush2.msra.mxu0 0.0
    %1151 = vmatprep.subr.mxu0 0.0
    %1152 = vmatpush2.msra.mxu0 0.0
    %1153 = vmatprep.subr.mxu0 0.0
    %1154 = vmatpush2.msra.mxu0 0.0
    %1155 = vmatprep.mubr.f32.mxu0 0.0
    %1156 = vmatmul.mubr.f32.gmra.mxu0 1.0
    %v1157 = vpop.f32.mrf.mxu0
    %v1158 = vadd.f32 0.0, %v1157
    %v1159 = vpop.f32.mrf.mxu0
    %1160 = vdwg.mxu0
    %v1161 = vmul.f32 %v1158, 0.0078125
    %v1162 = vmul.f32 %v1074, %v1074
    %v1163 = vsub.f32 %v1161, %v1162
    %v1164 = vmax.f32 %v1163, 0.0
    %v1165 = vadd.f32 %v1164, 1e-05
    %v1166 = vrsqrt.pop %v1165
    %v1167 = vld [vmem:[%s10] sm:$0x3]
    %1168 = vmatprep.subr.mxu0 0.0
    %1169 = vmatpush1.msra.mxu0 %v1003
    %1170 = vmatprep.subr.mxu0 0.0
    %1171 = vmatpush1.msra.mxu0 %v1002
    %1172 = vmatprep.subr.mxu0 0.0
    %1173 = vmatpush1.msra.mxu0 %v1001
    %1174 = vmatprep.subr.mxu0 0.0
    %1175 = vmatpush1.msra.mxu0 %v1000
    %1176 = vmatprep.subr.mxu0 0.0
    %1177 = vmatpush1.msra.mxu0 %v999
    %1178 = vmatprep.subr.mxu0 0.0
    %1179 = vmatpush1.msra.mxu0 %v998
    %1180 = vmatprep.subr.mxu0 0.0
    %1181 = vmatpush1.msra.mxu0 %v997
    %1182 = vmatprep.subr.mxu0 0.0
    %1183 = vmatpush1.msra.mxu0 %v996
    %1184 = vmatprep.subr.mxu0 0.0
    %1185 = vmatpush1.msra.mxu0 %v995
    %1186 = vmatprep.subr.mxu0 0.0
    %1187 = vmatpush1.msra.mxu0 %v994
    %1188 = vmatprep.subr.mxu0 0.0
    %1189 = vmatpush1.msra.mxu0 %v993
    %1190 = vmatprep.subr.mxu0 0.0
    %1191 = vmatpush1.msra.mxu0 %v992
    %1192 = vmatprep.subr.mxu0 0.0
    %1193 = vmatpush1.msra.mxu0 %v991
    %1194 = vmatprep.subr.mxu0 0.0
    %1195 = vmatpush1.msra.mxu0 %v990
    %1196 = vmatprep.subr.mxu0 0.0
    %1197 = vmatpush1.msra.mxu0 %v989
    %1198 = vmatprep.subr.mxu0 0.0
    %1199 = vmatpush1.msra.mxu0 %v988
    %1200 = vmatprep.subr.mxu0 0.0
    %1201 = vmatpush2.msra.mxu0 0.0
    %1202 = vmatprep.subr.mxu0 0.0
    %1203 = vmatpush2.msra.mxu0 0.0
    %1204 = vmatprep.subr.mxu0 0.0
    %1205 = vmatpush2.msra.mxu0 0.0
    %1206 = vmatprep.subr.mxu0 0.0
    %1207 = vmatpush2.msra.mxu0 0.0
    %1208 = vmatprep.subr.mxu0 0.0
    %1209 = vmatpush2.msra.mxu0 0.0
    %1210 = vmatprep.subr.mxu0 0.0
    %1211 = vmatpush2.msra.mxu0 0.0
    %1212 = vmatprep.subr.mxu0 0.0
    %1213 = vmatpush2.msra.mxu0 0.0
    %1214 = vmatprep.subr.mxu0 0.0
    %1215 = vmatpush2.msra.mxu0 0.0
    %1216 = vmatprep.subr.mxu0 0.0
    %1217 = vmatpush2.msra.mxu0 0.0
    %1218 = vmatprep.subr.mxu0 0.0
    %1219 = vmatpush2.msra.mxu0 0.0
    %1220 = vmatprep.subr.mxu0 0.0
    %1221 = vmatpush2.msra.mxu0 0.0
    %1222 = vmatprep.subr.mxu0 0.0
    %1223 = vmatpush2.msra.mxu0 0.0
    %1224 = vmatprep.subr.mxu0 0.0
    %1225 = vmatpush2.msra.mxu0 0.0
    %1226 = vmatprep.subr.mxu0 0.0
    %1227 = vmatpush2.msra.mxu0 0.0
    %1228 = vmatprep.subr.mxu0 0.0
    %1229 = vmatpush2.msra.mxu0 0.0
    %1230 = vmatprep.subr.mxu0 0.0
    %1231 = vmatpush2.msra.mxu0 0.0
    %1232 = vmatprep.mubr.f32.mxu0 0.0
    %1233 = vmatmul.mubr.f32.gmra.mxu0 %v1167
    %v1234 = vpop.f32.mrf.mxu0
    %v1235 = vadd.f32 0.0, %v1234
    %v1236 = vpop.f32.mrf.mxu0
    %1237 = vdwg.mxu0
    %s1238 = sld [smem:[#allocation2]]
    %v1239 = vld [vmem:[%s8] sm:$0x1]
    %v1240 = vmul.f32 %v1166, %v1239
    %v1241 = vstv %s1238
    %v1242 = vmul.f32 %v1240, %v1241
    %v1243 = vld [vmem:[%s9] sm:$0x1]
    %v1244 = vmul.f32 %v1074, %v1166
    %v1245 = vmul.f32 %v1244, %v1239
    %v1246 = vsub.f32 %v1243, %v1245
    %v1247 = vmul.f32 %v1246, %v1241
    %v1248 = vlaneseq
    %v1249 = vshrl.u32 %v1248, 7
    %v1250 = vsub.s32 0, %v1249
    %v1251 = vrot.slane %v1242, %v1250
    %v1252 = vmul.f32 %v1235, %v1251
    %v1254 = vlaneseq
    %v1255 = vshrl.u32 %v1254, 7
    %v1256 = vsub.s32 0, %v1255
    %v1257 = vrot.slane %v1247, %v1256
    %v1259 = vadd.f32 %v1252, %v1257
    %1260 = vst [vmem:[#allocation3] sm:$0x3] %v1259
    // Predicated region
    $region50: #{fine_tune_map_forward.1} parent=1 // pred_check
      _
    $region51: #{fine_tune_map_forward.1} parent=1 // pred_check_branch
      %1262 = sbr.rel (0) target = $region53
    $region52: #{fine_tune_map_forward.1} parent=1 // pred_region
      %s1264 = ssub.s32 32, 32
      %1265 = vsyncadd [#allocation4], %s1264
      %s1267 = sshll.u32 [#allocation3], 4
      %s1268 = int_to_ptr.vmem [resolvable:$true] %s1267
      %1270 = dma.vmem_to_hbm [thread:$0]  %s1268, 32, %s12, [#allocation4]
    $region53: #{fine_tune_map_forward.1} parent=1 // pred_fallthru
      _
    // Predicated region
    $region54: #{fine_tune_map_forward.1} parent=1 // pred_check
      _
    $region55: #{fine_tune_map_forward.1} parent=1 // pred_check_branch
      %1272 = sbr.rel (0) target = $region57
    $region56: #{fine_tune_map_forward.1} parent=1 // pred_region
      %1273 = dma.done [#allocation4], 32
    $region57: #{fine_tune_map_forward.1} parent=1 // pred_fallthru
      _
    %1274 = vsyncpa [#allocation4], 1

</llo_original>
